<compile_context>
chip_gen: v7x
topology: tpu7x:2x2x1
jax: 0.10.0
libtpu: 0.0.40
codegen_flags: <defaults>
</compile_context>

<pallas_src>
import functools
import math

import jax
import jax.numpy as jnp
from jax import lax
from jax.experimental import pallas as pl
from jax.experimental.pallas import tpu as pltpu


# --------------------------------------------------------------------------
# Fused encoder + classifier-head kernel.  grid = (batch, layer).
# --------------------------------------------------------------------------

def _encoder_kernel(x_ref, mask_ref,
                    ln_eg_ref, ln_eb_ref,
                    wqkv_ref, bqkv_ref, wo_ref, bo_ref,
                    ln1g_ref, ln1b_ref,
                    w1_ref, b1_ref, w2_ref, b2_ref,
                    ln2g_ref, ln2b_ref,
                    hw_ref, hb_ref,
                    out_ref,
                    x_sc, s_sc, ctx_sc,
                    *, num_heads, head_dim, eps):
    layer = pl.program_id(1)
    num_layers = pl.num_programs(1)
    S, H = x_ref.shape                                     # (seq, hidden)

    def layernorm(v, g, b):
        mu = jnp.mean(v, axis=-1, keepdims=True)
        var = jnp.mean((v - mu) ** 2, axis=-1, keepdims=True)
        return (v - mu) * lax.rsqrt(var + eps) * g + b

    def mm(a_bf, b_bf):
        # bf16 MXU inputs, f32 accumulation.
        return jnp.dot(a_bf, b_bf, preferred_element_type=jnp.float32)

    # ---- embedding LayerNorm: once per batch element (first layer step) ----
    @pl.when(layer == 0)
    def _():
        x_sc[...] = layernorm(x_ref[...].astype(jnp.float32),
                              ln_eg_ref[...], ln_eb_ref[...])

    x = x_sc[...]                                          # (S, H) f32 residual
    neg = (1.0 - mask_ref[...]) * (-1e9)                   # (1, S) additive key mask

    # ---------------- multi-head self-attention ----------------
    # NOTE: 1/sqrt(head_dim) is pre-folded into the Q columns of wqkv / bqkv.
    qkv = mm(x.astype(jnp.bfloat16), wqkv_ref[...]) + bqkv_ref[...]   # (S, 3H) f32
    qkv_bf = qkv.astype(jnp.bfloat16)                      # single cast for all heads

    dn_qkt = (((1,), (1,)), ((), ()))                      # q @ k^T
    # TODO(synk): for large num_heads convert this static loop to
    # lax.fori_loop(..., unroll=True) over a qkv scratch ref to bound vreg pressure.
    for h in range(num_heads):
        q_sl = slice(h * head_dim, (h + 1) * head_dim)
        k_sl = slice(H + h * head_dim, H + (h + 1) * head_dim)
        s_sc[h * S:(h + 1) * S, :] = lax.dot_general(      # scratch write, no concat
            qkv_bf[:, q_sl], qkv_bf[:, k_sl], dn_qkt,
            preferred_element_type=jnp.float32)

    s = s_sc[...] + neg                                    # (nh*S, S) f32
    m = jnp.max(s, axis=-1, keepdims=True)
    e = jnp.exp(s - m)
    p = e * pl.reciprocal(jnp.sum(e, axis=-1, keepdims=True), approx=True)
    p_bf = p.astype(jnp.bfloat16)                          # single cast for all heads

    for h in range(num_heads):
        v_sl = slice(2 * H + h * head_dim, 2 * H + (h + 1) * head_dim)
        ctx_sc[:, h * head_dim:(h + 1) * head_dim] = mm(   # scratch write, no concat
            p_bf[h * S:(h + 1) * S, :], qkv_bf[:, v_sl])

    attn = mm(ctx_sc[...].astype(jnp.bfloat16), wo_ref[...]) + bo_ref[...]  # (S, H)
    x = layernorm(attn + x, ln1g_ref[...], ln1b_ref[...])

    # ---------------- feed-forward ----------------
    h1 = mm(x.astype(jnp.bfloat16), w1_ref[...]) + b1_ref[...]              # (S, F)
    # TODO(synk): HF BERT uses exact (erf) GELU; tanh approximation used here.
    h1 = jax.nn.gelu(h1, approximate=True)
    ff = mm(h1.astype(jnp.bfloat16), w2_ref[...]) + b2_ref[...]             # (S, H)
    x = layernorm(ff + x, ln2g_ref[...], ln2b_ref[...])

    x_sc[...] = x                                          # carry to next layer step

    # ---------------- CLS classifier head (last layer only) ----------------
    @pl.when(layer == num_layers - 1)
    def _():
        out_ref[...] = mm(x[0:1, :].astype(jnp.bfloat16), hw_ref[...]) + hb_ref[...]


# --------------------------------------------------------------------------
# Wrapper
# --------------------------------------------------------------------------

def _nbytes(a):
    return int(a.size) * a.dtype.itemsize


def transformer_model_forward(params, input_ids, attention_mask, *, num_heads):
    """Equivalent of TransformerModel.forward: encoder -> H[:, 0] -> Linear."""
    B, S = input_ids.shape
    H = params["word_emb"].shape[1]
    L = params["wqkv"].shape[0]
    F = params["w1"].shape[2]
    C = params["head_w"].shape[1]
    head_dim = H // num_heads

    # Embedding gather (glue, not hot path).  Shipped bf16 to halve the only
    # per-grid-step activation DMA; LN math stays f32 inside the kernel.
    emb = (params["word_emb"][input_ids]
           + params["pos_emb"][None, :S, :]).astype(jnp.bfloat16)        # (B, S, H)
    mask = attention_mask.astype(jnp.float32).reshape(B, 1, S)

    # Fold 1/sqrt(head_dim) into the Q third of the fused QKV weight/bias
    # (free in the wrapper; removes the score-tensor multiply in the kernel).
    scale_vec = jnp.concatenate([
        jnp.full((H,), 1.0 / math.sqrt(head_dim), jnp.float32),
        jnp.ones((2 * H,), jnp.float32)])
    wqkv = (params["wqkv"].astype(jnp.float32) * scale_vec).astype(params["wqkv"].dtype)
    bqkv = params["bqkv"] * scale_vec
    p = dict(params, wqkv=wqkv, bqkv=bqkv)

    per_layer_names = ("wqkv", "bqkv", "wo", "bo", "ln1_g", "ln1_b",
                       "w1", "b1", "w2", "b2", "ln2_g", "ln2_b")
    const_pre = ("ln_emb_g", "ln_emb_b")
    const_post = ("head_w", "head_b")

    def layer_spec(arr):
        # stacked (L, d0, d1) weight -> per-layer (d0, d1) block, streamed per step
        return pl.BlockSpec((None,) + arr.shape[1:], lambda b, l: (l, 0, 0))

    def const_spec(arr):
        # constant across the whole grid -> single-buffered (no wasted 2nd buffer)
        nd = arr.ndim
        return pl.BlockSpec(arr.shape, lambda b, l: (0,) * nd,
                            pipeline_mode=pl.Buffered(1))

    weight_names = const_pre + per_layer_names + const_post
    weight_args = [p[n] for n in weight_names]
    weight_specs = ([const_spec(p[n]) for n in const_pre]
                    + [layer_spec(p[n]) for n in per_layer_names]
                    + [const_spec(p[n]) for n in const_post])

    # Advisory cost estimate for XLA scheduling around the fused call.
    flops_layer = 8 * S * H * H + 4 * S * S * H + 4 * S * H * F
    cost = pl.CostEstimate(
        flops=B * (L * flops_layer + 2 * H * C),
        transcendentals=B * L * (num_heads * S * S + S * F),
        bytes_accessed=int(_nbytes(emb) + _nbytes(mask) + B * C * 4
                           + B * sum(_nbytes(p[n]) for n in weight_names)))

    # VMEM budget: 2 buffers of one layer's weights + activations + scratch.
    per_layer_block = sum(_nbytes(p[n][0]) for n in per_layer_names)
    const_block = sum(_nbytes(p[n]) for n in const_pre + const_post)
    act_block = S * H * 2 + S * 4 + C * 4
    scratch_bytes = 4 * (2 * S * H + num_heads * S * S)
    vmem_est = 2 * (per_layer_block + act_block) + const_block + scratch_bytes
    vmem_limit = int(min(64 << 20, max(32 << 20, 3 * vmem_est)))

    out = pl.pallas_call(
        functools.partial(_encoder_kernel, num_heads=num_heads,
                          head_dim=head_dim, eps=1e-12),
        out_shape=jax.ShapeDtypeStruct((B, 1, C), jnp.float32),
        grid_spec=pltpu.PrefetchScalarGridSpec(
            num_scalar_prefetch=0,
            grid=(B, L),
            in_specs=[pl.BlockSpec((None, S, H), lambda b, l: (b, 0, 0)),
                      pl.BlockSpec((None, 1, S), lambda b, l: (b, 0, 0))]
                     + weight_specs,
            out_specs=pl.BlockSpec((None, 1, C), lambda b, l: (b, 0, 0)),
            scratch_shapes=[pltpu.VMEM((S, H), jnp.float32),              # residual x
                            pltpu.VMEM((num_heads * S, S), jnp.float32),  # stacked scores
                            pltpu.VMEM((S, H), jnp.float32)]),            # per-head ctx
        compiler_params=pltpu.CompilerParams(
            dimension_semantics=("parallel", "arbitrary"),
            vmem_limit_bytes=vmem_limit),
        cost_estimate=cost,
    )(emb, mask, *weight_args)
    return out[:, 0, :]                                                   # (B, C)


# --------------------------------------------------------------------------
# Parameter init (synthetic BERT-style encoder; layer weights stacked on axis 0)
# --------------------------------------------------------------------------

def init_params(key, *, vocab, max_pos, hidden, ffn_dim, num_layers, num_classes):
    std = 0.02
    H, F, L = hidden, ffn_dim, num_layers

    def nrm(k, shape, dtype=jnp.float32):
        return (std * jax.random.normal(k, shape, dtype=jnp.float32)).astype(dtype)

    ks = iter(jax.random.split(key, 8))
    return {
        "word_emb": nrm(next(ks), (vocab, H)),
        "pos_emb": nrm(next(ks), (max_pos, H)),
        "ln_emb_g": jnp.ones((1, H), jnp.float32),
        "ln_emb_b": jnp.zeros((1, H), jnp.float32),
        # matmul weights stored bf16 (MXU inputs, halved DMA); biases/LN in f32
        "wqkv": nrm(next(ks), (L, H, 3 * H), jnp.bfloat16),
        "bqkv": jnp.zeros((L, 1, 3 * H), jnp.float32),
        "wo": nrm(next(ks), (L, H, H), jnp.bfloat16),
        "bo": jnp.zeros((L, 1, H), jnp.float32),
        "ln1_g": jnp.ones((L, 1, H), jnp.float32),
        "ln1_b": jnp.zeros((L, 1, H), jnp.float32),
        "w1": nrm(next(ks), (L, H, F), jnp.bfloat16),
        "b1": jnp.zeros((L, 1, F), jnp.float32),
        "w2": nrm(next(ks), (L, F, H), jnp.bfloat16),
        "b2": jnp.zeros((L, 1, H), jnp.float32),
        "ln2_g": jnp.ones((L, 1, H), jnp.float32),
        "ln2_b": jnp.zeros((L, 1, H), jnp.float32),
        "head_w": nrm(next(ks), (H, num_classes), jnp.bfloat16),
        "head_b": jnp.zeros((1, num_classes), jnp.float32),
    }


# --------------------------------------------------------------------------
# Main
# --------------------------------------------------------------------------

if __name__ == "__main__":
    B, S, H = 2, 8, 32
    NUM_HEADS, FFN, LAYERS = 4, 64, 2
    VOCAB, MAX_POS, NUM_CLASSES = 50, 16, 2

    key = jax.random.PRNGKey(0)
    k_params, k_ids = jax.random.split(key)

    params = init_params(k_params, vocab=VOCAB, max_pos=MAX_POS, hidden=H,
                         ffn_dim=FFN, num_layers=LAYERS, num_classes=NUM_CLASSES)

    input_ids = jax.random.randint(k_ids, (B, S), 0, VOCAB, dtype=jnp.int32)
    attention_mask = jnp.ones((B, S), jnp.float32).at[1, 6:].set(0.0)  # pad last 2 of batch 1

    logits = transformer_model_forward(params, input_ids, attention_mask,
                                       num_heads=NUM_HEADS)
    jax.block_until_ready(logits)
    assert logits.shape == (B, NUM_CLASSES)
    assert bool(jnp.all(jnp.isfinite(logits)))
    print("KERNEL_OK")
</pallas_src>

<mosaic_0001>
module attributes {stable_mosaic.version = 11 : i64} {
  func.func @_encoder_kernel(%arg0: i32, %arg1: i32, %arg2: memref<1x8x32xbf16, #tpu.memory_space<vmem>>, %arg3: memref<1x1x8xf32, #tpu.memory_space<vmem>>, %arg4: memref<1x32xf32, #tpu.memory_space<vmem>>, %arg5: memref<1x32xf32, #tpu.memory_space<vmem>>, %arg6: memref<1x32x96xbf16, #tpu.memory_space<vmem>>, %arg7: memref<1x1x96xf32, #tpu.memory_space<vmem>>, %arg8: memref<1x32x32xbf16, #tpu.memory_space<vmem>>, %arg9: memref<1x1x32xf32, #tpu.memory_space<vmem>>, %arg10: memref<1x1x32xf32, #tpu.memory_space<vmem>>, %arg11: memref<1x1x32xf32, #tpu.memory_space<vmem>>, %arg12: memref<1x32x64xbf16, #tpu.memory_space<vmem>>, %arg13: memref<1x1x64xf32, #tpu.memory_space<vmem>>, %arg14: memref<1x64x32xbf16, #tpu.memory_space<vmem>>, %arg15: memref<1x1x32xf32, #tpu.memory_space<vmem>>, %arg16: memref<1x1x32xf32, #tpu.memory_space<vmem>>, %arg17: memref<1x1x32xf32, #tpu.memory_space<vmem>>, %arg18: memref<32x2xbf16, #tpu.memory_space<vmem>>, %arg19: memref<1x2xf32, #tpu.memory_space<vmem>>, %arg20: memref<1x1x2xf32, #tpu.memory_space<vmem>>, %arg21: memref<8x32xf32, #tpu.memory_space<vmem>>, %arg22: memref<32x8xf32, #tpu.memory_space<vmem>>, %arg23: memref<8x32xf32, #tpu.memory_space<vmem>>) attributes {dimension_semantics = [#tpu.dimension_semantics<parallel>, #tpu.dimension_semantics<arbitrary>], iteration_bounds = array<i64: 2, 2>, scalar_prefetch = 0 : i64, scratch_operands = 3 : i64, tpu.core_type = #tpu.core_type<tc>, window_params = [{transform_indices = @transform_0, window_bounds = array<i64: 1, 8, 32>}, {transform_indices = @transform_1, window_bounds = array<i64: 1, 1, 8>}, {pipeline_mode = #tpu.pipeline_mode<synchronous>, transform_indices = @transform_2, window_bounds = array<i64: 1, 32>}, {pipeline_mode = #tpu.pipeline_mode<synchronous>, transform_indices = @transform_3, window_bounds = array<i64: 1, 32>}, {transform_indices = @transform_4, window_bounds = array<i64: 1, 32, 96>}, {transform_indices = @transform_5, window_bounds = array<i64: 1, 1, 96>}, {transform_indices = @transform_6, window_bounds = array<i64: 1, 32, 32>}, {transform_indices = @transform_7, window_bounds = array<i64: 1, 1, 32>}, {transform_indices = @transform_8, window_bounds = array<i64: 1, 1, 32>}, {transform_indices = @transform_9, window_bounds = array<i64: 1, 1, 32>}, {transform_indices = @transform_10, window_bounds = array<i64: 1, 32, 64>}, {transform_indices = @transform_11, window_bounds = array<i64: 1, 1, 64>}, {transform_indices = @transform_12, window_bounds = array<i64: 1, 64, 32>}, {transform_indices = @transform_13, window_bounds = array<i64: 1, 1, 32>}, {transform_indices = @transform_14, window_bounds = array<i64: 1, 1, 32>}, {transform_indices = @transform_15, window_bounds = array<i64: 1, 1, 32>}, {pipeline_mode = #tpu.pipeline_mode<synchronous>, transform_indices = @transform_16, window_bounds = array<i64: 32, 2>}, {pipeline_mode = #tpu.pipeline_mode<synchronous>, transform_indices = @transform_17, window_bounds = array<i64: 1, 2>}, {transform_indices = @transform_18, window_bounds = array<i64: 1, 1, 2>}]} {
    %c0_i32 = arith.constant 0 : i32
    %0 = arith.cmpi eq, %arg1, %c0_i32 : i32
    %1 = arith.extui %0 : i1 to i32
    %c0_i32_0 = arith.constant 0 : i32
    %2 = arith.cmpi ne, %1, %c0_i32_0 : i32
    scf.if %2 {
      %c0_90 = arith.constant 0 : index
      %c0_91 = arith.constant 0 : index
      %c0_92 = arith.constant 0 : index
      %161 = vector.load %arg2[%c0_90, %c0_91, %c0_92] : memref<1x8x32xbf16, #tpu.memory_space<vmem>>, vector<1x8x32xbf16>
      %162 = vector.shape_cast %161 : vector<1x8x32xbf16> to vector<8x32xbf16>
      %163 = arith.extf %162 : vector<8x32xbf16> to vector<8x32xf32>
      %c0_93 = arith.constant 0 : index
      %c0_94 = arith.constant 0 : index
      %164 = vector.load %arg4[%c0_93, %c0_94] : memref<1x32xf32, #tpu.memory_space<vmem>>, vector<1x32xf32>
      %c0_95 = arith.constant 0 : index
      %c0_96 = arith.constant 0 : index
      %165 = vector.load %arg5[%c0_95, %c0_96] : memref<1x32xf32, #tpu.memory_space<vmem>>, vector<1x32xf32>
      %cst_97 = arith.constant dense<0.000000e+00> : vector<8xf32>
      %166 = vector.multi_reduction <add>, %163, %cst_97 [1] : vector<8x32xf32> to vector<8xf32>
      %167 = vector.shape_cast %166 : vector<8xf32> to vector<8x1xf32>
      %cst_98 = arith.constant 3.200000e+01 : f32
      %168 = vector.broadcast %cst_98 : f32 to vector<8x1xf32>
      %169 = arith.divf %167, %168 : vector<8x1xf32>
      %170 = vector.broadcast %169 : vector<8x1xf32> to vector<8x32xf32>
      %171 = arith.subf %163, %170 : vector<8x32xf32>
      %172 = arith.mulf %171, %171 : vector<8x32xf32>
      %cst_99 = arith.constant dense<0.000000e+00> : vector<8xf32>
      %173 = vector.multi_reduction <add>, %172, %cst_99 [1] : vector<8x32xf32> to vector<8xf32>
      %174 = vector.shape_cast %173 : vector<8xf32> to vector<8x1xf32>
      %cst_100 = arith.constant 3.200000e+01 : f32
      %175 = vector.broadcast %cst_100 : f32 to vector<8x1xf32>
      %176 = arith.divf %174, %175 : vector<8x1xf32>
      %177 = vector.broadcast %169 : vector<8x1xf32> to vector<8x32xf32>
      %178 = arith.subf %163, %177 : vector<8x32xf32>
      %cst_101 = arith.constant 9.99999996E-13 : f32
      %179 = vector.broadcast %cst_101 : f32 to vector<8x1xf32>
      %180 = arith.addf %176, %179 : vector<8x1xf32>
      %181 = math.rsqrt %180 : vector<8x1xf32>
      %182 = vector.broadcast %181 : vector<8x1xf32> to vector<8x32xf32>
      %183 = arith.mulf %178, %182 : vector<8x32xf32>
      %184 = vector.broadcast %164 : vector<1x32xf32> to vector<8x32xf32>
      %185 = arith.mulf %183, %184 : vector<8x32xf32>
      %186 = vector.broadcast %165 : vector<1x32xf32> to vector<8x32xf32>
      %187 = arith.addf %185, %186 : vector<8x32xf32>
      %c0_102 = arith.constant 0 : index
      %c0_103 = arith.constant 0 : index
      %188 = vector.load %arg21[%c0_102, %c0_103] : memref<8x32xf32, #tpu.memory_space<vmem>>, vector<8x32xf32>
      tpu.vector_store %arg21[%c0_102, %c0_103], %187 {strides = array<i32>} : memref<8x32xf32, #tpu.memory_space<vmem>>, vector<8x32xf32>,
    } else {
    }
    %c0 = arith.constant 0 : index
    %c0_1 = arith.constant 0 : index
    %3 = vector.load %arg21[%c0, %c0_1] : memref<8x32xf32, #tpu.memory_space<vmem>>, vector<8x32xf32>
    %c0_2 = arith.constant 0 : index
    %c0_3 = arith.constant 0 : index
    %c0_4 = arith.constant 0 : index
    %4 = vector.load %arg3[%c0_2, %c0_3, %c0_4] : memref<1x1x8xf32, #tpu.memory_space<vmem>>, vector<1x1x8xf32>
    %5 = vector.shape_cast %4 : vector<1x1x8xf32> to vector<1x8xf32>
    %cst = arith.constant 1.000000e+00 : f32
    %6 = vector.broadcast %cst : f32 to vector<1x8xf32>
    %7 = arith.subf %6, %5 : vector<1x8xf32>
    %cst_5 = arith.constant -1.000000e+09 : f32
    %8 = vector.broadcast %cst_5 : f32 to vector<1x8xf32>
    %9 = arith.mulf %7, %8 : vector<1x8xf32>
    %10 = arith.truncf %3 : vector<8x32xf32> to vector<8x32xbf16>
    %c0_6 = arith.constant 0 : index
    %c0_7 = arith.constant 0 : index
    %c0_8 = arith.constant 0 : index
    %11 = vector.load %arg6[%c0_6, %c0_7, %c0_8] : memref<1x32x96xbf16, #tpu.memory_space<vmem>>, vector<1x32x96xbf16>
    %12 = vector.shape_cast %11 : vector<1x32x96xbf16> to vector<32x96xbf16>
    %cst_9 = arith.constant dense<0.000000e+00> : vector<8x96xf32>
    %13 = tpu.matmul %10, %12, %cst_9 {dimension_numbers = #tpu.dot_dimension_numbers<[1], [0], [0], [1], [0, 0, 1, 1], [], []>} : vector<8x32xbf16>, vector<32x96xbf16>, vector<8x96xf32> -> vector<8x96xf32>
    %c0_10 = arith.constant 0 : index
    %c0_11 = arith.constant 0 : index
    %c0_12 = arith.constant 0 : index
    %14 = vector.load %arg7[%c0_10, %c0_11, %c0_12] : memref<1x1x96xf32, #tpu.memory_space<vmem>>, vector<1x1x96xf32>
    %15 = vector.shape_cast %14 : vector<1x1x96xf32> to vector<1x96xf32>
    %16 = vector.broadcast %15 : vector<1x96xf32> to vector<8x96xf32>
    %17 = arith.addf %13, %16 : vector<8x96xf32>
    %18 = arith.truncf %17 : vector<8x96xf32> to vector<8x96xbf16>
    %19 = vector.extract_strided_slice %18 {offsets = [0, 0], sizes = [8, 8], strides = [1, 1]} : vector<8x96xbf16> to vector<8x8xbf16>
    %20 = vector.extract_strided_slice %18 {offsets = [0, 32], sizes = [8, 8], strides = [1, 1]} : vector<8x96xbf16> to vector<8x8xbf16>
    %cst_13 = arith.constant dense<0.000000e+00> : vector<8x8xf32>
    %21 = tpu.matmul %19, %20, %cst_13 {dimension_numbers = #tpu.dot_dimension_numbers<[1], [1], [0], [0], [0, 0, 1, 0], [], []>} : vector<8x8xbf16>, vector<8x8xbf16>, vector<8x8xf32> -> vector<8x8xf32>
    %c0_14 = arith.constant 0 : index
    %c0_15 = arith.constant 0 : index
    %22 = vector.load %arg22[%c0_14, %c0_15] : memref<32x8xf32, #tpu.memory_space<vmem>>, vector<8x8xf32>
    tpu.vector_store %arg22[%c0_14, %c0_15], %21 {strides = array<i32>} : memref<32x8xf32, #tpu.memory_space<vmem>>, vector<8x8xf32>,
    %23 = vector.extract_strided_slice %18 {offsets = [0, 8], sizes = [8, 8], strides = [1, 1]} : vector<8x96xbf16> to vector<8x8xbf16>
    %24 = vector.extract_strided_slice %18 {offsets = [0, 40], sizes = [8, 8], strides = [1, 1]} : vector<8x96xbf16> to vector<8x8xbf16>
    %cst_16 = arith.constant dense<0.000000e+00> : vector<8x8xf32>
    %25 = tpu.matmul %23, %24, %cst_16 {dimension_numbers = #tpu.dot_dimension_numbers<[1], [1], [0], [0], [0, 0, 1, 0], [], []>} : vector<8x8xbf16>, vector<8x8xbf16>, vector<8x8xf32> -> vector<8x8xf32>
    %c8 = arith.constant 8 : index
    %c0_17 = arith.constant 0 : index
    %26 = vector.load %arg22[%c8, %c0_17] : memref<32x8xf32, #tpu.memory_space<vmem>>, vector<8x8xf32>
    tpu.vector_store %arg22[%c8, %c0_17], %25 {strides = array<i32>} : memref<32x8xf32, #tpu.memory_space<vmem>>, vector<8x8xf32>,
    %27 = vector.extract_strided_slice %18 {offsets = [0, 16], sizes = [8, 8], strides = [1, 1]} : vector<8x96xbf16> to vector<8x8xbf16>
    %28 = vector.extract_strided_slice %18 {offsets = [0, 48], sizes = [8, 8], strides = [1, 1]} : vector<8x96xbf16> to vector<8x8xbf16>
    %cst_18 = arith.constant dense<0.000000e+00> : vector<8x8xf32>
    %29 = tpu.matmul %27, %28, %cst_18 {dimension_numbers = #tpu.dot_dimension_numbers<[1], [1], [0], [0], [0, 0, 1, 0], [], []>} : vector<8x8xbf16>, vector<8x8xbf16>, vector<8x8xf32> -> vector<8x8xf32>
    %c16 = arith.constant 16 : index
    %c0_19 = arith.constant 0 : index
    %30 = vector.load %arg22[%c16, %c0_19] : memref<32x8xf32, #tpu.memory_space<vmem>>, vector<8x8xf32>
    tpu.vector_store %arg22[%c16, %c0_19], %29 {strides = array<i32>} : memref<32x8xf32, #tpu.memory_space<vmem>>, vector<8x8xf32>,
    %31 = vector.extract_strided_slice %18 {offsets = [0, 24], sizes = [8, 8], strides = [1, 1]} : vector<8x96xbf16> to vector<8x8xbf16>
    %32 = vector.extract_strided_slice %18 {offsets = [0, 56], sizes = [8, 8], strides = [1, 1]} : vector<8x96xbf16> to vector<8x8xbf16>
    %cst_20 = arith.constant dense<0.000000e+00> : vector<8x8xf32>
    %33 = tpu.matmul %31, %32, %cst_20 {dimension_numbers = #tpu.dot_dimension_numbers<[1], [1], [0], [0], [0, 0, 1, 0], [], []>} : vector<8x8xbf16>, vector<8x8xbf16>, vector<8x8xf32> -> vector<8x8xf32>
    %c24 = arith.constant 24 : index
    %c0_21 = arith.constant 0 : index
    %34 = vector.load %arg22[%c24, %c0_21] : memref<32x8xf32, #tpu.memory_space<vmem>>, vector<8x8xf32>
    tpu.vector_store %arg22[%c24, %c0_21], %33 {strides = array<i32>} : memref<32x8xf32, #tpu.memory_space<vmem>>, vector<8x8xf32>,
    %c0_22 = arith.constant 0 : index
    %c0_23 = arith.constant 0 : index
    %35 = vector.load %arg22[%c0_22, %c0_23] : memref<32x8xf32, #tpu.memory_space<vmem>>, vector<32x8xf32>
    %36 = vector.broadcast %9 : vector<1x8xf32> to vector<32x8xf32>
    %37 = arith.addf %35, %36 : vector<32x8xf32>
    %cst_24 = arith.constant dense<0xFF800000> : vector<32xf32>
    %38 = vector.multi_reduction <maximumf>, %37, %cst_24 [1] : vector<32x8xf32> to vector<32xf32>
    %39 = vector.shape_cast %38 : vector<32xf32> to vector<32x1xf32>
    %40 = vector.broadcast %39 : vector<32x1xf32> to vector<32x8xf32>
    %41 = arith.subf %37, %40 : vector<32x8xf32>
    %42 = math.exp %41 : vector<32x8xf32>
    %cst_25 = arith.constant dense<0.000000e+00> : vector<32xf32>
    %43 = vector.multi_reduction <add>, %42, %cst_25 [1] : vector<32x8xf32> to vector<32xf32>
    %44 = vector.shape_cast %43 : vector<32xf32> to vector<32x1xf32>
    %45 = tpu.reciprocal %44 {approx = true} : vector<32x1xf32> -> vector<32x1xf32>
    %46 = vector.broadcast %45 : vector<32x1xf32> to vector<32x8xf32>
    %47 = arith.mulf %42, %46 : vector<32x8xf32>
    %48 = arith.truncf %47 : vector<32x8xf32> to vector<32x8xbf16>
    %49 = vector.extract_strided_slice %48 {offsets = [0, 0], sizes = [8, 8], strides = [1, 1]} : vector<32x8xbf16> to vector<8x8xbf16>
    %50 = vector.extract_strided_slice %18 {offsets = [0, 64], sizes = [8, 8], strides = [1, 1]} : vector<8x96xbf16> to vector<8x8xbf16>
    %cst_26 = arith.constant dense<0.000000e+00> : vector<8x8xf32>
    %51 = tpu.matmul %49, %50, %cst_26 {dimension_numbers = #tpu.dot_dimension_numbers<[1], [0], [0], [1], [0, 0, 1, 1], [], []>} : vector<8x8xbf16>, vector<8x8xbf16>, vector<8x8xf32> -> vector<8x8xf32>
    %c0_27 = arith.constant 0 : index
    %c0_28 = arith.constant 0 : index
    %52 = vector.load %arg23[%c0_27, %c0_28] : memref<8x32xf32, #tpu.memory_space<vmem>>, vector<8x8xf32>
    tpu.vector_store %arg23[%c0_27, %c0_28], %51 {strides = array<i32>} : memref<8x32xf32, #tpu.memory_space<vmem>>, vector<8x8xf32>,
    %53 = vector.extract_strided_slice %48 {offsets = [8, 0], sizes = [8, 8], strides = [1, 1]} : vector<32x8xbf16> to vector<8x8xbf16>
    %54 = vector.extract_strided_slice %18 {offsets = [0, 72], sizes = [8, 8], strides = [1, 1]} : vector<8x96xbf16> to vector<8x8xbf16>
    %cst_29 = arith.constant dense<0.000000e+00> : vector<8x8xf32>
    %55 = tpu.matmul %53, %54, %cst_29 {dimension_numbers = #tpu.dot_dimension_numbers<[1], [0], [0], [1], [0, 0, 1, 1], [], []>} : vector<8x8xbf16>, vector<8x8xbf16>, vector<8x8xf32> -> vector<8x8xf32>
    %c0_30 = arith.constant 0 : index
    %c8_31 = arith.constant 8 : index
    %56 = vector.load %arg23[%c0_30, %c8_31] : memref<8x32xf32, #tpu.memory_space<vmem>>, vector<8x8xf32>
    tpu.vector_store %arg23[%c0_30, %c8_31], %55 {strides = array<i32>} : memref<8x32xf32, #tpu.memory_space<vmem>>, vector<8x8xf32>,
    %57 = vector.extract_strided_slice %48 {offsets = [16, 0], sizes = [8, 8], strides = [1, 1]} : vector<32x8xbf16> to vector<8x8xbf16>
    %58 = vector.extract_strided_slice %18 {offsets = [0, 80], sizes = [8, 8], strides = [1, 1]} : vector<8x96xbf16> to vector<8x8xbf16>
    %cst_32 = arith.constant dense<0.000000e+00> : vector<8x8xf32>
    %59 = tpu.matmul %57, %58, %cst_32 {dimension_numbers = #tpu.dot_dimension_numbers<[1], [0], [0], [1], [0, 0, 1, 1], [], []>} : vector<8x8xbf16>, vector<8x8xbf16>, vector<8x8xf32> -> vector<8x8xf32>
    %c0_33 = arith.constant 0 : index
    %c16_34 = arith.constant 16 : index
    %60 = vector.load %arg23[%c0_33, %c16_34] : memref<8x32xf32, #tpu.memory_space<vmem>>, vector<8x8xf32>
    tpu.vector_store %arg23[%c0_33, %c16_34], %59 {strides = array<i32>} : memref<8x32xf32, #tpu.memory_space<vmem>>, vector<8x8xf32>,
    %61 = vector.extract_strided_slice %48 {offsets = [24, 0], sizes = [8, 8], strides = [1, 1]} : vector<32x8xbf16> to vector<8x8xbf16>
    %62 = vector.extract_strided_slice %18 {offsets = [0, 88], sizes = [8, 8], strides = [1, 1]} : vector<8x96xbf16> to vector<8x8xbf16>
    %cst_35 = arith.constant dense<0.000000e+00> : vector<8x8xf32>
    %63 = tpu.matmul %61, %62, %cst_35 {dimension_numbers = #tpu.dot_dimension_numbers<[1], [0], [0], [1], [0, 0, 1, 1], [], []>} : vector<8x8xbf16>, vector<8x8xbf16>, vector<8x8xf32> -> vector<8x8xf32>
    %c0_36 = arith.constant 0 : index
    %c24_37 = arith.constant 24 : index
    %64 = vector.load %arg23[%c0_36, %c24_37] : memref<8x32xf32, #tpu.memory_space<vmem>>, vector<8x8xf32>
    tpu.vector_store %arg23[%c0_36, %c24_37], %63 {strides = array<i32>} : memref<8x32xf32, #tpu.memory_space<vmem>>, vector<8x8xf32>,
    %c0_38 = arith.constant 0 : index
    %c0_39 = arith.constant 0 : index
    %65 = vector.load %arg23[%c0_38, %c0_39] : memref<8x32xf32, #tpu.memory_space<vmem>>, vector<8x32xf32>
    %66 = arith.truncf %65 : vector<8x32xf32> to vector<8x32xbf16>
    %c0_40 = arith.constant 0 : index
    %c0_41 = arith.constant 0 : index
    %c0_42 = arith.constant 0 : index
    %67 = vector.load %arg8[%c0_40, %c0_41, %c0_42] : memref<1x32x32xbf16, #tpu.memory_space<vmem>>, vector<1x32x32xbf16>
    %68 = vector.shape_cast %67 : vector<1x32x32xbf16> to vector<32x32xbf16>
    %cst_43 = arith.constant dense<0.000000e+00> : vector<8x32xf32>
    %69 = tpu.matmul %66, %68, %cst_43 {dimension_numbers = #tpu.dot_dimension_numbers<[1], [0], [0], [1], [0, 0, 1, 1], [], []>} : vector<8x32xbf16>, vector<32x32xbf16>, vector<8x32xf32> -> vector<8x32xf32>
    %c0_44 = arith.constant 0 : index
    %c0_45 = arith.constant 0 : index
    %c0_46 = arith.constant 0 : index
    %70 = vector.load %arg9[%c0_44, %c0_45, %c0_46] : memref<1x1x32xf32, #tpu.memory_space<vmem>>, vector<1x1x32xf32>
    %71 = vector.shape_cast %70 : vector<1x1x32xf32> to vector<1x32xf32>
    %72 = vector.broadcast %71 : vector<1x32xf32> to vector<8x32xf32>
    %73 = arith.addf %69, %72 : vector<8x32xf32>
    %74 = arith.addf %73, %3 : vector<8x32xf32>
    %c0_47 = arith.constant 0 : index
    %c0_48 = arith.constant 0 : index
    %c0_49 = arith.constant 0 : index
    %75 = vector.load %arg10[%c0_47, %c0_48, %c0_49] : memref<1x1x32xf32, #tpu.memory_space<vmem>>, vector<1x1x32xf32>
    %76 = vector.shape_cast %75 : vector<1x1x32xf32> to vector<1x32xf32>
    %c0_50 = arith.constant 0 : index
    %c0_51 = arith.constant 0 : index
    %c0_52 = arith.constant 0 : index
    %77 = vector.load %arg11[%c0_50, %c0_51, %c0_52] : memref<1x1x32xf32, #tpu.memory_space<vmem>>, vector<1x1x32xf32>
    %78 = vector.shape_cast %77 : vector<1x1x32xf32> to vector<1x32xf32>
    %cst_53 = arith.constant dense<0.000000e+00> : vector<8xf32>
    %79 = vector.multi_reduction <add>, %74, %cst_53 [1] : vector<8x32xf32> to vector<8xf32>
    %80 = vector.shape_cast %79 : vector<8xf32> to vector<8x1xf32>
    %cst_54 = arith.constant 3.200000e+01 : f32
    %81 = vector.broadcast %cst_54 : f32 to vector<8x1xf32>
    %82 = arith.divf %80, %81 : vector<8x1xf32>
    %83 = vector.broadcast %82 : vector<8x1xf32> to vector<8x32xf32>
    %84 = arith.subf %74, %83 : vector<8x32xf32>
    %85 = arith.mulf %84, %84 : vector<8x32xf32>
    %cst_55 = arith.constant dense<0.000000e+00> : vector<8xf32>
    %86 = vector.multi_reduction <add>, %85, %cst_55 [1] : vector<8x32xf32> to vector<8xf32>
    %87 = vector.shape_cast %86 : vector<8xf32> to vector<8x1xf32>
    %cst_56 = arith.constant 3.200000e+01 : f32
    %88 = vector.broadcast %cst_56 : f32 to vector<8x1xf32>
    %89 = arith.divf %87, %88 : vector<8x1xf32>
    %90 = vector.broadcast %82 : vector<8x1xf32> to vector<8x32xf32>
    %91 = arith.subf %74, %90 : vector<8x32xf32>
    %cst_57 = arith.constant 9.99999996E-13 : f32
    %92 = vector.broadcast %cst_57 : f32 to vector<8x1xf32>
    %93 = arith.addf %89, %92 : vector<8x1xf32>
    %94 = math.rsqrt %93 : vector<8x1xf32>
    %95 = vector.broadcast %94 : vector<8x1xf32> to vector<8x32xf32>
    %96 = arith.mulf %91, %95 : vector<8x32xf32>
    %97 = vector.broadcast %76 : vector<1x32xf32> to vector<8x32xf32>
    %98 = arith.mulf %96, %97 : vector<8x32xf32>
    %99 = vector.broadcast %78 : vector<1x32xf32> to vector<8x32xf32>
    %100 = arith.addf %98, %99 : vector<8x32xf32>
    %101 = arith.truncf %100 : vector<8x32xf32> to vector<8x32xbf16>
    %c0_58 = arith.constant 0 : index
    %c0_59 = arith.constant 0 : index
    %c0_60 = arith.constant 0 : index
    %102 = vector.load %arg12[%c0_58, %c0_59, %c0_60] : memref<1x32x64xbf16, #tpu.memory_space<vmem>>, vector<1x32x64xbf16>
    %103 = vector.shape_cast %102 : vector<1x32x64xbf16> to vector<32x64xbf16>
    %cst_61 = arith.constant dense<0.000000e+00> : vector<8x64xf32>
    %104 = tpu.matmul %101, %103, %cst_61 {dimension_numbers = #tpu.dot_dimension_numbers<[1], [0], [0], [1], [0, 0, 1, 1], [], []>} : vector<8x32xbf16>, vector<32x64xbf16>, vector<8x64xf32> -> vector<8x64xf32>
    %c0_62 = arith.constant 0 : index
    %c0_63 = arith.constant 0 : index
    %c0_64 = arith.constant 0 : index
    %105 = vector.load %arg13[%c0_62, %c0_63, %c0_64] : memref<1x1x64xf32, #tpu.memory_space<vmem>>, vector<1x1x64xf32>
    %106 = vector.shape_cast %105 : vector<1x1x64xf32> to vector<1x64xf32>
    %107 = vector.broadcast %106 : vector<1x64xf32> to vector<8x64xf32>
    %108 = arith.addf %104, %107 : vector<8x64xf32>
    %109 = arith.mulf %108, %108 : vector<8x64xf32>
    %110 = arith.mulf %108, %109 : vector<8x64xf32>
    %cst_65 = arith.constant 4.471500e-02 : f32
    %111 = vector.broadcast %cst_65 : f32 to vector<8x64xf32>
    %112 = arith.mulf %111, %110 : vector<8x64xf32>
    %113 = arith.addf %108, %112 : vector<8x64xf32>
    %cst_66 = arith.constant 0.797884583 : f32
    %114 = vector.broadcast %cst_66 : f32 to vector<8x64xf32>
    %115 = arith.mulf %114, %113 : vector<8x64xf32>
    %116 = math.tanh %115 : vector<8x64xf32>
    %cst_67 = arith.constant 1.000000e+00 : f32
    %117 = vector.broadcast %cst_67 : f32 to vector<8x64xf32>
    %118 = arith.addf %117, %116 : vector<8x64xf32>
    %cst_68 = arith.constant 5.000000e-01 : f32
    %119 = vector.broadcast %cst_68 : f32 to vector<8x64xf32>
    %120 = arith.mulf %119, %118 : vector<8x64xf32>
    %121 = arith.mulf %108, %120 : vector<8x64xf32>
    %122 = arith.truncf %121 : vector<8x64xf32> to vector<8x64xbf16>
    %c0_69 = arith.constant 0 : index
    %c0_70 = arith.constant 0 : index
    %c0_71 = arith.constant 0 : index
    %123 = vector.load %arg14[%c0_69, %c0_70, %c0_71] : memref<1x64x32xbf16, #tpu.memory_space<vmem>>, vector<1x64x32xbf16>
    %124 = vector.shape_cast %123 : vector<1x64x32xbf16> to vector<64x32xbf16>
    %cst_72 = arith.constant dense<0.000000e+00> : vector<8x32xf32>
    %125 = tpu.matmul %122, %124, %cst_72 {dimension_numbers = #tpu.dot_dimension_numbers<[1], [0], [0], [1], [0, 0, 1, 1], [], []>} : vector<8x64xbf16>, vector<64x32xbf16>, vector<8x32xf32> -> vector<8x32xf32>
    %c0_73 = arith.constant 0 : index
    %c0_74 = arith.constant 0 : index
    %c0_75 = arith.constant 0 : index
    %126 = vector.load %arg15[%c0_73, %c0_74, %c0_75] : memref<1x1x32xf32, #tpu.memory_space<vmem>>, vector<1x1x32xf32>
    %127 = vector.shape_cast %126 : vector<1x1x32xf32> to vector<1x32xf32>
    %128 = vector.broadcast %127 : vector<1x32xf32> to vector<8x32xf32>
    %129 = arith.addf %125, %128 : vector<8x32xf32>
    %130 = arith.addf %129, %100 : vector<8x32xf32>
    %c0_76 = arith.constant 0 : index
    %c0_77 = arith.constant 0 : index
    %c0_78 = arith.constant 0 : index
    %131 = vector.load %arg16[%c0_76, %c0_77, %c0_78] : memref<1x1x32xf32, #tpu.memory_space<vmem>>, vector<1x1x32xf32>
    %132 = vector.shape_cast %131 : vector<1x1x32xf32> to vector<1x32xf32>
    %c0_79 = arith.constant 0 : index
    %c0_80 = arith.constant 0 : index
    %c0_81 = arith.constant 0 : index
    %133 = vector.load %arg17[%c0_79, %c0_80, %c0_81] : memref<1x1x32xf32, #tpu.memory_space<vmem>>, vector<1x1x32xf32>
    %134 = vector.shape_cast %133 : vector<1x1x32xf32> to vector<1x32xf32>
    %cst_82 = arith.constant dense<0.000000e+00> : vector<8xf32>
    %135 = vector.multi_reduction <add>, %130, %cst_82 [1] : vector<8x32xf32> to vector<8xf32>
    %136 = vector.shape_cast %135 : vector<8xf32> to vector<8x1xf32>
    %cst_83 = arith.constant 3.200000e+01 : f32
    %137 = vector.broadcast %cst_83 : f32 to vector<8x1xf32>
    %138 = arith.divf %136, %137 : vector<8x1xf32>
    %139 = vector.broadcast %138 : vector<8x1xf32> to vector<8x32xf32>
    %140 = arith.subf %130, %139 : vector<8x32xf32>
    %141 = arith.mulf %140, %140 : vector<8x32xf32>
    %cst_84 = arith.constant dense<0.000000e+00> : vector<8xf32>
    %142 = vector.multi_reduction <add>, %141, %cst_84 [1] : vector<8x32xf32> to vector<8xf32>
    %143 = vector.shape_cast %142 : vector<8xf32> to vector<8x1xf32>
    %cst_85 = arith.constant 3.200000e+01 : f32
    %144 = vector.broadcast %cst_85 : f32 to vector<8x1xf32>
    %145 = arith.divf %143, %144 : vector<8x1xf32>
    %146 = vector.broadcast %138 : vector<8x1xf32> to vector<8x32xf32>
    %147 = arith.subf %130, %146 : vector<8x32xf32>
    %cst_86 = arith.constant 9.99999996E-13 : f32
    %148 = vector.broadcast %cst_86 : f32 to vector<8x1xf32>
    %149 = arith.addf %145, %148 : vector<8x1xf32>
    %150 = math.rsqrt %149 : vector<8x1xf32>
    %151 = vector.broadcast %150 : vector<8x1xf32> to vector<8x32xf32>
    %152 = arith.mulf %147, %151 : vector<8x32xf32>
    %153 = vector.broadcast %132 : vector<1x32xf32> to vector<8x32xf32>
    %154 = arith.mulf %152, %153 : vector<8x32xf32>
    %155 = vector.broadcast %134 : vector<1x32xf32> to vector<8x32xf32>
    %156 = arith.addf %154, %155 : vector<8x32xf32>
    %c0_87 = arith.constant 0 : index
    %c0_88 = arith.constant 0 : index
    %157 = vector.load %arg21[%c0_87, %c0_88] : memref<8x32xf32, #tpu.memory_space<vmem>>, vector<8x32xf32>
    tpu.vector_store %arg21[%c0_87, %c0_88], %156 {strides = array<i32>} : memref<8x32xf32, #tpu.memory_space<vmem>>, vector<8x32xf32>,
    %c1_i32 = arith.constant 1 : i32
    %158 = arith.cmpi eq, %arg1, %c1_i32 : i32
    %159 = arith.extui %158 : i1 to i32
    %c0_i32_89 = arith.constant 0 : i32
    %160 = arith.cmpi ne, %159, %c0_i32_89 : i32
    scf.if %160 {
      %161 = vector.extract_strided_slice %156 {offsets = [0, 0], sizes = [1, 32], strides = [1, 1]} : vector<8x32xf32> to vector<1x32xf32>
      %162 = arith.truncf %161 : vector<1x32xf32> to vector<1x32xbf16>
      %c0_90 = arith.constant 0 : index
      %c0_91 = arith.constant 0 : index
      %163 = vector.load %arg18[%c0_90, %c0_91] : memref<32x2xbf16, #tpu.memory_space<vmem>>, vector<32x2xbf16>
      %cst_92 = arith.constant dense<0.000000e+00> : vector<1x2xf32>
      %164 = tpu.matmul %162, %163, %cst_92 {dimension_numbers = #tpu.dot_dimension_numbers<[1], [0], [0], [1], [0, 0, 1, 1], [], []>} : vector<1x32xbf16>, vector<32x2xbf16>, vector<1x2xf32> -> vector<1x2xf32>
      %c0_93 = arith.constant 0 : index
      %c0_94 = arith.constant 0 : index
      %165 = vector.load %arg19[%c0_93, %c0_94] : memref<1x2xf32, #tpu.memory_space<vmem>>, vector<1x2xf32>
      %166 = arith.addf %164, %165 : vector<1x2xf32>
      %c0_95 = arith.constant 0 : index
      %c0_96 = arith.constant 0 : index
      %c0_97 = arith.constant 0 : index
      %167 = vector.load %arg20[%c0_95, %c0_96, %c0_97] : memref<1x1x2xf32, #tpu.memory_space<vmem>>, vector<1x1x2xf32>
      %168 = vector.shape_cast %167 : vector<1x1x2xf32> to vector<1x2xf32>
      %169 = vector.shape_cast %166 : vector<1x2xf32> to vector<1x1x2xf32>
      tpu.vector_store %arg20[%c0_95, %c0_96, %c0_97], %169 {strides = array<i32>} : memref<1x1x2xf32, #tpu.memory_space<vmem>>, vector<1x1x2xf32>,
    } else {
    }
    return
  }
  func.func @transform_0(%arg0: i32, %arg1: i32) -> (i32, i32, i32) {
    %c0_i32 = arith.constant 0 : i32
    %c0_i32_0 = arith.constant 0 : i32
    %c0_i32_1 = arith.constant 0 : i32
    return %arg0, %c0_i32, %c0_i32_0 : i32, i32, i32
  }
  func.func @transform_1(%arg0: i32, %arg1: i32) -> (i32, i32, i32) {
    %c0_i32 = arith.constant 0 : i32
    %c0_i32_0 = arith.constant 0 : i32
    %c0_i32_1 = arith.constant 0 : i32
    return %arg0, %c0_i32, %c0_i32_0 : i32, i32, i32
  }
  func.func @transform_2(%arg0: i32, %arg1: i32) -> (i32, i32) {
    %c0_i32 = arith.constant 0 : i32
    %c0_i32_0 = arith.constant 0 : i32
    %c0_i32_1 = arith.constant 0 : i32
    return %c0_i32, %c0_i32_0 : i32, i32
  }
  func.func @transform_3(%arg0: i32, %arg1: i32) -> (i32, i32) {
    %c0_i32 = arith.constant 0 : i32
    %c0_i32_0 = arith.constant 0 : i32
    %c0_i32_1 = arith.constant 0 : i32
    return %c0_i32, %c0_i32_0 : i32, i32
  }
  func.func @transform_4(%arg0: i32, %arg1: i32) -> (i32, i32, i32) {
    %c0_i32 = arith.constant 0 : i32
    %c0_i32_0 = arith.constant 0 : i32
    %c0_i32_1 = arith.constant 0 : i32
    return %arg1, %c0_i32, %c0_i32_0 : i32, i32, i32
  }
  func.func @transform_5(%arg0: i32, %arg1: i32) -> (i32, i32, i32) {
    %c0_i32 = arith.constant 0 : i32
    %c0_i32_0 = arith.constant 0 : i32
    %c0_i32_1 = arith.constant 0 : i32
    return %arg1, %c0_i32, %c0_i32_0 : i32, i32, i32
  }
  func.func @transform_6(%arg0: i32, %arg1: i32) -> (i32, i32, i32) {
    %c0_i32 = arith.constant 0 : i32
    %c0_i32_0 = arith.constant 0 : i32
    %c0_i32_1 = arith.constant 0 : i32
    return %arg1, %c0_i32, %c0_i32_0 : i32, i32, i32
  }
  func.func @transform_7(%arg0: i32, %arg1: i32) -> (i32, i32, i32) {
    %c0_i32 = arith.constant 0 : i32
    %c0_i32_0 = arith.constant 0 : i32
    %c0_i32_1 = arith.constant 0 : i32
    return %arg1, %c0_i32, %c0_i32_0 : i32, i32, i32
  }
  func.func @transform_8(%arg0: i32, %arg1: i32) -> (i32, i32, i32) {
    %c0_i32 = arith.constant 0 : i32
    %c0_i32_0 = arith.constant 0 : i32
    %c0_i32_1 = arith.constant 0 : i32
    return %arg1, %c0_i32, %c0_i32_0 : i32, i32, i32
  }
  func.func @transform_9(%arg0: i32, %arg1: i32) -> (i32, i32, i32) {
    %c0_i32 = arith.constant 0 : i32
    %c0_i32_0 = arith.constant 0 : i32
    %c0_i32_1 = arith.constant 0 : i32
    return %arg1, %c0_i32, %c0_i32_0 : i32, i32, i32
  }
  func.func @transform_10(%arg0: i32, %arg1: i32) -> (i32, i32, i32) {
    %c0_i32 = arith.constant 0 : i32
    %c0_i32_0 = arith.constant 0 : i32
    %c0_i32_1 = arith.constant 0 : i32
    return %arg1, %c0_i32, %c0_i32_0 : i32, i32, i32
  }
  func.func @transform_11(%arg0: i32, %arg1: i32) -> (i32, i32, i32) {
    %c0_i32 = arith.constant 0 : i32
    %c0_i32_0 = arith.constant 0 : i32
    %c0_i32_1 = arith.constant 0 : i32
    return %arg1, %c0_i32, %c0_i32_0 : i32, i32, i32
  }
  func.func @transform_12(%arg0: i32, %arg1: i32) -> (i32, i32, i32) {
    %c0_i32 = arith.constant 0 : i32
    %c0_i32_0 = arith.constant 0 : i32
    %c0_i32_1 = arith.constant 0 : i32
    return %arg1, %c0_i32, %c0_i32_0 : i32, i32, i32
  }
  func.func @transform_13(%arg0: i32, %arg1: i32) -> (i32, i32, i32) {
    %c0_i32 = arith.constant 0 : i32
    %c0_i32_0 = arith.constant 0 : i32
    %c0_i32_1 = arith.constant 0 : i32
    return %arg1, %c0_i32, %c0_i32_0 : i32, i32, i32
  }
  func.func @transform_14(%arg0: i32, %arg1: i32) -> (i32, i32, i32) {
    %c0_i32 = arith.constant 0 : i32
    %c0_i32_0 = arith.constant 0 : i32
    %c0_i32_1 = arith.constant 0 : i32
    return %arg1, %c0_i32, %c0_i32_0 : i32, i32, i32
  }
  func.func @transform_15(%arg0: i32, %arg1: i32) -> (i32, i32, i32) {
    %c0_i32 = arith.constant 0 : i32
    %c0_i32_0 = arith.constant 0 : i32
    %c0_i32_1 = arith.constant 0 : i32
    return %arg1, %c0_i32, %c0_i32_0 : i32, i32, i32
  }
  func.func @transform_16(%arg0: i32, %arg1: i32) -> (i32, i32) {
    %c0_i32 = arith.constant 0 : i32
    %c0_i32_0 = arith.constant 0 : i32
    %c0_i32_1 = arith.constant 0 : i32
    return %c0_i32, %c0_i32_0 : i32, i32
  }
  func.func @transform_17(%arg0: i32, %arg1: i32) -> (i32, i32) {
    %c0_i32 = arith.constant 0 : i32
    %c0_i32_0 = arith.constant 0 : i32
    %c0_i32_1 = arith.constant 0 : i32
    return %c0_i32, %c0_i32_0 : i32, i32
  }
  func.func @transform_18(%arg0: i32, %arg1: i32) -> (i32, i32, i32) {
    %c0_i32 = arith.constant 0 : i32
    %c0_i32_0 = arith.constant 0 : i32
    %c0_i32_1 = arith.constant 0 : i32
    return %arg0, %c0_i32, %c0_i32_0 : i32, i32, i32
  }
}

</mosaic_0001>

<llo_original>
// kernel: tpu_custom_call.1
$region0: #{tpu_custom_call.1}
  #allocation0 [shape = 'u32[]', space=smem, size = 0x4, offset = 0x4, fixed_abs, tag = 'smem constant byte address 0x4 - core index']
  #allocation1 [shape = 'u32[144,128]{1,0:T(1,128)}', space=vmem, size = 0x12000, scoped, tag = 'internal scratch']
  #allocation2 [shape = 'f32[8,32]{1,0:T(8,128)}', space=vmem, size = 0x1000, scoped, tag = 'scratch operand']
  #allocation3 [shape = 'f32[32,8]{1,0:T(8,128)}', space=vmem, size = 0x4000, scoped, tag = 'scratch operand']
  #allocation4 [shape = 'f32[8,32]{1,0:T(8,128)}', space=vmem, size = 0x1000, scoped, tag = 'scratch operand']
  %s0 = inlined_call_operand.vmem [shape: bf16[2,8,32], index: 0, kind: input, shape index: {}]
  %s1 = inlined_call_operand.vmem [shape: f32[2,1,8], index: 1, kind: input, shape index: {}]
  %s2 = inlined_call_operand.hbm [shape: f32[1,32], index: 2, kind: input, shape index: {}]
  %s3 = inlined_call_operand.vmem [shape: f32[1,32], index: 3, kind: input, shape index: {}]
  %s4 = inlined_call_operand.vmem [shape: bf16[2,32,96], index: 4, kind: input, shape index: {}]
  %s5 = inlined_call_operand.vmem [shape: f32[2,1,96], index: 5, kind: input, shape index: {}]
  %s6 = inlined_call_operand.vmem [shape: bf16[2,32,32], index: 6, kind: input, shape index: {}]
  %s7 = inlined_call_operand.vmem [shape: f32[2,1,32], index: 7, kind: input, shape index: {}]
  %s8 = inlined_call_operand.vmem [shape: f32[2,1,32], index: 8, kind: input, shape index: {}]
  %s9 = inlined_call_operand.vmem [shape: f32[2,1,32], index: 9, kind: input, shape index: {}]
  %s10 = inlined_call_operand.vmem [shape: bf16[2,32,64], index: 10, kind: input, shape index: {}]
  %s11 = inlined_call_operand.vmem [shape: f32[2,1,64], index: 11, kind: input, shape index: {}]
  %s12 = inlined_call_operand.vmem [shape: bf16[2,64,32], index: 12, kind: input, shape index: {}]
  %s13 = inlined_call_operand.vmem [shape: f32[2,1,32], index: 13, kind: input, shape index: {}]
  %s14 = inlined_call_operand.vmem [shape: f32[2,1,32], index: 14, kind: input, shape index: {}]
  %s15 = inlined_call_operand.vmem [shape: f32[2,1,32], index: 15, kind: input, shape index: {}]
  %s16 = inlined_call_operand.vmem [shape: bf16[32,2], index: 16, kind: input, shape index: {}]
  %s17 = inlined_call_operand.vmem [shape: f32[1,2], index: 17, kind: input, shape index: {}]
  %s18 = inlined_call_operand.hbm [shape: f32[2,1,2], index: 18, kind: output, shape index: {}]
  %s19 = sld [smem:[#allocation0]]
  $region117: #{tpu_custom_call.1} parent=0
    _
  %s21 = ssub.s32 1, %s19
  %s22 = scalar_select 0, %s21, %s19
  $region1: #{tpu_custom_call.1} parent=0
    #allocation5 [shape = 'u8[512]{0}', space=vmem, size = 0x400, scoped, tag = 'input window, operand 2, single buffered']
    #allocation6 [shape = 's32[2]{0}', space=sflag, size = 0x8, scoped, tag = 'scoped memory for tpu_custom_call.1']
    #allocation7 [shape = 's32[2]{0}', space=sflag, size = 0x8, scoped, tag = 'scoped memory for tpu_custom_call.1']
    #allocation8 [shape = 'u8[1024]{0}', space=vmem, size = 0x400, scoped, tag = 'output window, operand 0']
    %23 = vsyncpa [#allocation6], 0
    %24 = vsyncpa [#allocation7], 0
    %s25 = scalar_lea.sflag [#allocation7], 1
    %26 = vsyncpa %s25, 0
    loop: start=0, step=1, limit=6
    $region2: #{tpu_custom_call.1} parent=1 // loop_pre_header
      _
    $region3: #{tpu_custom_call.1} parent=1 // loop_header
      %s28 = sphi 0, %s32
      %p29 = scmp.ge.s32.totalorder %s28, 6
      %s35 = sphi 0, %s47
      %s36 = sphi 0, %s43
      %s37 = sphi 0, %s35
      %s38 = sphi 0, %s36
      %s39 = sphi 0, %s37
      %s40 = sphi 0, %s38
      %s50 = sphi 0, %s52
      %s53 = sphi 0, %s50
      %s54 = sphi 0, %s53
      %s70 = sphi 0, %s54
      %s76 = sphi 0, %s78
      %s79 = sphi 0, %s76
      %s80 = sphi 0, %s79
      %s96 = sphi 0, %s80
      %s100 = sphi 0, %s100
      %s102 = sphi 0, %s100
      %s103 = sphi 0, %s102
      %s117 = sphi 0, %s103
      %s121 = sphi 0, %s121
      %s123 = sphi 0, %s121
      %s124 = sphi 0, %s123
      %s138 = sphi 0, %s124
      %s144 = sphi 0, %s146
      %s147 = sphi 0, %s144
      %s148 = sphi 0, %s147
      %s164 = sphi 0, %s148
      %s170 = sphi 0, %s172
      %s173 = sphi 0, %s170
      %s174 = sphi 0, %s173
      %s190 = sphi 0, %s174
      %s196 = sphi 0, %s198
      %s199 = sphi 0, %s196
      %s200 = sphi 0, %s199
      %s216 = sphi 0, %s200
      %s222 = sphi 0, %s224
      %s225 = sphi 0, %s222
      %s226 = sphi 0, %s225
      %s242 = sphi 0, %s226
      %s248 = sphi 0, %s250
      %s251 = sphi 0, %s248
      %s252 = sphi 0, %s251
      %s268 = sphi 0, %s252
      %s274 = sphi 0, %s276
      %s277 = sphi 0, %s274
      %s278 = sphi 0, %s277
      %s294 = sphi 0, %s278
      %s300 = sphi 0, %s302
      %s303 = sphi 0, %s300
      %s304 = sphi 0, %s303
      %s320 = sphi 0, %s304
      %s326 = sphi 0, %s328
      %s329 = sphi 0, %s326
      %s330 = sphi 0, %s329
      %s346 = sphi 0, %s330
      %s352 = sphi 0, %s354
      %s355 = sphi 0, %s352
      %s356 = sphi 0, %s355
      %s372 = sphi 0, %s356
      %s378 = sphi 0, %s380
      %s381 = sphi 0, %s378
      %s382 = sphi 0, %s381
      %s398 = sphi 0, %s382
      %s404 = sphi 0, %s406
      %s407 = sphi 0, %s404
      %s408 = sphi 0, %s407
      %s424 = sphi 0, %s408
      %s430 = sphi 0, %s432
      %s433 = sphi 0, %s430
      %s434 = sphi 0, %s433
      %s450 = sphi 0, %s434
      %s454 = sphi 0, %s454
      %s456 = sphi 0, %s454
      %s457 = sphi 0, %s456
      %s471 = sphi 0, %s457
      %s475 = sphi 0, %s475
      %s477 = sphi 0, %s475
      %s478 = sphi 0, %s477
      %s492 = sphi 0, %s478
      %s498 = sphi 0, %s500
      %s501 = sphi 0, %s498
      %s502 = sphi 0, %s501
      %s518 = sphi 0, %s502
    $region4: #{tpu_custom_call.1} parent=1 // loop_header_branch
      %31 = sbr.rel (%p29) target = $region8
    $region5: #{tpu_custom_call.1} parent=1 // loop_body
      %s33 = ssub.s32 %s28, 1
      %s34 = ssub.s32 %s28, 2
      %s41 = sadd.s32 1, %s36
      %p42 = scmp.ge.s32.totalorder %s41, 2
      %s43 = scalar_select %p42, 0, %s41
      %s44 = sadd.s32 1, %s35
      %s45 = scalar_select %p42, %s44, %s35
      %p46 = scmp.ge.s32.totalorder %s45, 2
      %s47 = scalar_select %p46, 0, %s45
      %s48 = ssub.s32 %s35, %s47
      %p49 = scmp.eq.s32.totalorder %s48, 0
      %s51 = sadd.s32 %s50, 1
      %s52 = scalar_select %p49, %s50, %s51
      %p55 = pneg %p49
      %p56 = scmp.eq.s32.totalorder %s28, 3
      %p57 = por %p55, %p56
      %p58 = scmp.ne.s32.totalorder %s50, %s53
      %p59 = scmp.eq.s32.totalorder %s28, 0
      %p60 = por %p58, %p59
      %p61 = scmp.ne.s32.totalorder %s50, %s53
      %p62 = scmp.eq.s32.totalorder %s33, 3
      %p63 = por %p61, %p62
      %p64 = scmp.ne.s32.totalorder %s53, %s54
      %p65 = scmp.eq.s32.totalorder %s33, 0
      %p66 = por %p64, %p65
      %p67 = scmp.ne.s32.totalorder %s53, %s54
      %p68 = scmp.eq.s32.totalorder %s34, 3
      %p69 = por %p67, %p68
      %p71 = scmp.ne.s32.totalorder %s54, %s70
      %p72 = scmp.eq.s32.totalorder %s34, 0
      %p73 = por %p71, %p72
      %s74 = ssub.s32 %s35, %s47
      %p75 = scmp.eq.s32.totalorder %s74, 0
      %s77 = sadd.s32 %s76, 1
      %s78 = scalar_select %p75, %s76, %s77
      %p81 = pneg %p75
      %p82 = scmp.eq.s32.totalorder %s28, 3
      %p83 = por %p81, %p82
      %p84 = scmp.ne.s32.totalorder %s76, %s79
      %p85 = scmp.eq.s32.totalorder %s28, 0
      %p86 = por %p84, %p85
      %p87 = scmp.ne.s32.totalorder %s76, %s79
      %p88 = scmp.eq.s32.totalorder %s33, 3
      %p89 = por %p87, %p88
      %p90 = scmp.ne.s32.totalorder %s79, %s80
      %p91 = scmp.eq.s32.totalorder %s33, 0
      %p92 = por %p90, %p91
      %p93 = scmp.ne.s32.totalorder %s79, %s80
      %p94 = scmp.eq.s32.totalorder %s34, 3
      %p95 = por %p93, %p94
      %p97 = scmp.ne.s32.totalorder %s80, %s96
      %p98 = scmp.eq.s32.totalorder %s34, 0
      %p99 = por %p97, %p98
      %s101 = sadd.s32 %s100, 1
      %p104 = scmp.eq.s32.totalorder %s28, 3
      %p105 = scmp.ne.s32.totalorder %s100, %s102
      %p106 = scmp.eq.s32.totalorder %s28, 0
      %p107 = por %p105, %p106
      %p108 = scmp.ne.s32.totalorder %s100, %s102
      %p109 = scmp.eq.s32.totalorder %s33, 3
      %p110 = por %p108, %p109
      %p111 = scmp.ne.s32.totalorder %s102, %s103
      %p112 = scmp.eq.s32.totalorder %s33, 0
      %p113 = por %p111, %p112
      %p114 = scmp.ne.s32.totalorder %s102, %s103
      %p115 = scmp.eq.s32.totalorder %s34, 3
      %p116 = por %p114, %p115
      %p118 = scmp.ne.s32.totalorder %s103, %s117
      %p119 = scmp.eq.s32.totalorder %s34, 0
      %p120 = por %p118, %p119
      %s122 = sadd.s32 %s121, 1
      %p125 = scmp.eq.s32.totalorder %s28, 3
      %p126 = scmp.ne.s32.totalorder %s121, %s123
      %p127 = scmp.eq.s32.totalorder %s28, 0
      %p128 = por %p126, %p127
      %p129 = scmp.ne.s32.totalorder %s121, %s123
      %p130 = scmp.eq.s32.totalorder %s33, 3
      %p131 = por %p129, %p130
      %p132 = scmp.ne.s32.totalorder %s123, %s124
      %p133 = scmp.eq.s32.totalorder %s33, 0
      %p134 = por %p132, %p133
      %p135 = scmp.ne.s32.totalorder %s123, %s124
      %p136 = scmp.eq.s32.totalorder %s34, 3
      %p137 = por %p135, %p136
      %p139 = scmp.ne.s32.totalorder %s124, %s138
      %p140 = scmp.eq.s32.totalorder %s34, 0
      %p141 = por %p139, %p140
      %s142 = ssub.s32 %s36, %s43
      %p143 = scmp.eq.s32.totalorder %s142, 0
      %s145 = sadd.s32 %s144, 1
      %s146 = scalar_select %p143, %s144, %s145
      %p149 = pneg %p143
      %p150 = scmp.eq.s32.totalorder %s28, 3
      %p151 = por %p149, %p150
      %p152 = scmp.ne.s32.totalorder %s144, %s147
      %p153 = scmp.eq.s32.totalorder %s28, 0
      %p154 = por %p152, %p153
      %p155 = scmp.ne.s32.totalorder %s144, %s147
      %p156 = scmp.eq.s32.totalorder %s33, 3
      %p157 = por %p155, %p156
      %p158 = scmp.ne.s32.totalorder %s147, %s148
      %p159 = scmp.eq.s32.totalorder %s33, 0
      %p160 = por %p158, %p159
      %p161 = scmp.ne.s32.totalorder %s147, %s148
      %p162 = scmp.eq.s32.totalorder %s34, 3
      %p163 = por %p161, %p162
      %p165 = scmp.ne.s32.totalorder %s148, %s164
      %p166 = scmp.eq.s32.totalorder %s34, 0
      %p167 = por %p165, %p166
      %s168 = ssub.s32 %s36, %s43
      %p169 = scmp.eq.s32.totalorder %s168, 0
      %s171 = sadd.s32 %s170, 1
      %s172 = scalar_select %p169, %s170, %s171
      %p175 = pneg %p169
      %p176 = scmp.eq.s32.totalorder %s28, 3
      %p177 = por %p175, %p176
      %p178 = scmp.ne.s32.totalorder %s170, %s173
      %p179 = scmp.eq.s32.totalorder %s28, 0
      %p180 = por %p178, %p179
      %p181 = scmp.ne.s32.totalorder %s170, %s173
      %p182 = scmp.eq.s32.totalorder %s33, 3
      %p183 = por %p181, %p182
      %p184 = scmp.ne.s32.totalorder %s173, %s174
      %p185 = scmp.eq.s32.totalorder %s33, 0
      %p186 = por %p184, %p185
      %p187 = scmp.ne.s32.totalorder %s173, %s174
      %p188 = scmp.eq.s32.totalorder %s34, 3
      %p189 = por %p187, %p188
      %p191 = scmp.ne.s32.totalorder %s174, %s190
      %p192 = scmp.eq.s32.totalorder %s34, 0
      %p193 = por %p191, %p192
      %s194 = ssub.s32 %s36, %s43
      %p195 = scmp.eq.s32.totalorder %s194, 0
      %s197 = sadd.s32 %s196, 1
      %s198 = scalar_select %p195, %s196, %s197
      %p201 = pneg %p195
      %p202 = scmp.eq.s32.totalorder %s28, 3
      %p203 = por %p201, %p202
      %p204 = scmp.ne.s32.totalorder %s196, %s199
      %p205 = scmp.eq.s32.totalorder %s28, 0
      %p206 = por %p204, %p205
      %p207 = scmp.ne.s32.totalorder %s196, %s199
      %p208 = scmp.eq.s32.totalorder %s33, 3
      %p209 = por %p207, %p208
      %p210 = scmp.ne.s32.totalorder %s199, %s200
      %p211 = scmp.eq.s32.totalorder %s33, 0
      %p212 = por %p210, %p211
      %p213 = scmp.ne.s32.totalorder %s199, %s200
      %p214 = scmp.eq.s32.totalorder %s34, 3
      %p215 = por %p213, %p214
      %p217 = scmp.ne.s32.totalorder %s200, %s216
      %p218 = scmp.eq.s32.totalorder %s34, 0
      %p219 = por %p217, %p218
      %s220 = ssub.s32 %s36, %s43
      %p221 = scmp.eq.s32.totalorder %s220, 0
      %s223 = sadd.s32 %s222, 1
      %s224 = scalar_select %p221, %s222, %s223
      %p227 = pneg %p221
      %p228 = scmp.eq.s32.totalorder %s28, 3
      %p229 = por %p227, %p228
      %p230 = scmp.ne.s32.totalorder %s222, %s225
      %p231 = scmp.eq.s32.totalorder %s28, 0
      %p232 = por %p230, %p231
      %p233 = scmp.ne.s32.totalorder %s222, %s225
      %p234 = scmp.eq.s32.totalorder %s33, 3
      %p235 = por %p233, %p234
      %p236 = scmp.ne.s32.totalorder %s225, %s226
      %p237 = scmp.eq.s32.totalorder %s33, 0
      %p238 = por %p236, %p237
      %p239 = scmp.ne.s32.totalorder %s225, %s226
      %p240 = scmp.eq.s32.totalorder %s34, 3
      %p241 = por %p239, %p240
      %p243 = scmp.ne.s32.totalorder %s226, %s242
      %p244 = scmp.eq.s32.totalorder %s34, 0
      %p245 = por %p243, %p244
      %s246 = ssub.s32 %s36, %s43
      %p247 = scmp.eq.s32.totalorder %s246, 0
      %s249 = sadd.s32 %s248, 1
      %s250 = scalar_select %p247, %s248, %s249
      %p253 = pneg %p247
      %p254 = scmp.eq.s32.totalorder %s28, 3
      %p255 = por %p253, %p254
      %p256 = scmp.ne.s32.totalorder %s248, %s251
      %p257 = scmp.eq.s32.totalorder %s28, 0
      %p258 = por %p256, %p257
      %p259 = scmp.ne.s32.totalorder %s248, %s251
      %p260 = scmp.eq.s32.totalorder %s33, 3
      %p261 = por %p259, %p260
      %p262 = scmp.ne.s32.totalorder %s251, %s252
      %p263 = scmp.eq.s32.totalorder %s33, 0
      %p264 = por %p262, %p263
      %p265 = scmp.ne.s32.totalorder %s251, %s252
      %p266 = scmp.eq.s32.totalorder %s34, 3
      %p267 = por %p265, %p266
      %p269 = scmp.ne.s32.totalorder %s252, %s268
      %p270 = scmp.eq.s32.totalorder %s34, 0
      %p271 = por %p269, %p270
      %s272 = ssub.s32 %s36, %s43
      %p273 = scmp.eq.s32.totalorder %s272, 0
      %s275 = sadd.s32 %s274, 1
      %s276 = scalar_select %p273, %s274, %s275
      %p279 = pneg %p273
      %p280 = scmp.eq.s32.totalorder %s28, 3
      %p281 = por %p279, %p280
      %p282 = scmp.ne.s32.totalorder %s274, %s277
      %p283 = scmp.eq.s32.totalorder %s28, 0
      %p284 = por %p282, %p283
      %p285 = scmp.ne.s32.totalorder %s274, %s277
      %p286 = scmp.eq.s32.totalorder %s33, 3
      %p287 = por %p285, %p286
      %p288 = scmp.ne.s32.totalorder %s277, %s278
      %p289 = scmp.eq.s32.totalorder %s33, 0
      %p290 = por %p288, %p289
      %p291 = scmp.ne.s32.totalorder %s277, %s278
      %p292 = scmp.eq.s32.totalorder %s34, 3
      %p293 = por %p291, %p292
      %p295 = scmp.ne.s32.totalorder %s278, %s294
      %p296 = scmp.eq.s32.totalorder %s34, 0
      %p297 = por %p295, %p296
      %s298 = ssub.s32 %s36, %s43
      %p299 = scmp.eq.s32.totalorder %s298, 0
      %s301 = sadd.s32 %s300, 1
      %s302 = scalar_select %p299, %s300, %s301
      %p305 = pneg %p299
      %p306 = scmp.eq.s32.totalorder %s28, 3
      %p307 = por %p305, %p306
      %p308 = scmp.ne.s32.totalorder %s300, %s303
      %p309 = scmp.eq.s32.totalorder %s28, 0
      %p310 = por %p308, %p309
      %p311 = scmp.ne.s32.totalorder %s300, %s303
      %p312 = scmp.eq.s32.totalorder %s33, 3
      %p313 = por %p311, %p312
      %p314 = scmp.ne.s32.totalorder %s303, %s304
      %p315 = scmp.eq.s32.totalorder %s33, 0
      %p316 = por %p314, %p315
      %p317 = scmp.ne.s32.totalorder %s303, %s304
      %p318 = scmp.eq.s32.totalorder %s34, 3
      %p319 = por %p317, %p318
      %p321 = scmp.ne.s32.totalorder %s304, %s320
      %p322 = scmp.eq.s32.totalorder %s34, 0
      %p323 = por %p321, %p322
      %s324 = ssub.s32 %s36, %s43
      %p325 = scmp.eq.s32.totalorder %s324, 0
      %s327 = sadd.s32 %s326, 1
      %s328 = scalar_select %p325, %s326, %s327
      %p331 = pneg %p325
      %p332 = scmp.eq.s32.totalorder %s28, 3
      %p333 = por %p331, %p332
      %p334 = scmp.ne.s32.totalorder %s326, %s329
      %p335 = scmp.eq.s32.totalorder %s28, 0
      %p336 = por %p334, %p335
      %p337 = scmp.ne.s32.totalorder %s326, %s329
      %p338 = scmp.eq.s32.totalorder %s33, 3
      %p339 = por %p337, %p338
      %p340 = scmp.ne.s32.totalorder %s329, %s330
      %p341 = scmp.eq.s32.totalorder %s33, 0
      %p342 = por %p340, %p341
      %p343 = scmp.ne.s32.totalorder %s329, %s330
      %p344 = scmp.eq.s32.totalorder %s34, 3
      %p345 = por %p343, %p344
      %p347 = scmp.ne.s32.totalorder %s330, %s346
      %p348 = scmp.eq.s32.totalorder %s34, 0
      %p349 = por %p347, %p348
      %s350 = ssub.s32 %s36, %s43
      %p351 = scmp.eq.s32.totalorder %s350, 0
      %s353 = sadd.s32 %s352, 1
      %s354 = scalar_select %p351, %s352, %s353
      %p357 = pneg %p351
      %p358 = scmp.eq.s32.totalorder %s28, 3
      %p359 = por %p357, %p358
      %p360 = scmp.ne.s32.totalorder %s352, %s355
      %p361 = scmp.eq.s32.totalorder %s28, 0
      %p362 = por %p360, %p361
      %p363 = scmp.ne.s32.totalorder %s352, %s355
      %p364 = scmp.eq.s32.totalorder %s33, 3
      %p365 = por %p363, %p364
      %p366 = scmp.ne.s32.totalorder %s355, %s356
      %p367 = scmp.eq.s32.totalorder %s33, 0
      %p368 = por %p366, %p367
      %p369 = scmp.ne.s32.totalorder %s355, %s356
      %p370 = scmp.eq.s32.totalorder %s34, 3
      %p371 = por %p369, %p370
      %p373 = scmp.ne.s32.totalorder %s356, %s372
      %p374 = scmp.eq.s32.totalorder %s34, 0
      %p375 = por %p373, %p374
      %s376 = ssub.s32 %s36, %s43
      %p377 = scmp.eq.s32.totalorder %s376, 0
      %s379 = sadd.s32 %s378, 1
      %s380 = scalar_select %p377, %s378, %s379
      %p383 = pneg %p377
      %p384 = scmp.eq.s32.totalorder %s28, 3
      %p385 = por %p383, %p384
      %p386 = scmp.ne.s32.totalorder %s378, %s381
      %p387 = scmp.eq.s32.totalorder %s28, 0
      %p388 = por %p386, %p387
      %p389 = scmp.ne.s32.totalorder %s378, %s381
      %p390 = scmp.eq.s32.totalorder %s33, 3
      %p391 = por %p389, %p390
      %p392 = scmp.ne.s32.totalorder %s381, %s382
      %p393 = scmp.eq.s32.totalorder %s33, 0
      %p394 = por %p392, %p393
      %p395 = scmp.ne.s32.totalorder %s381, %s382
      %p396 = scmp.eq.s32.totalorder %s34, 3
      %p397 = por %p395, %p396
      %p399 = scmp.ne.s32.totalorder %s382, %s398
      %p400 = scmp.eq.s32.totalorder %s34, 0
      %p401 = por %p399, %p400
      %s402 = ssub.s32 %s36, %s43
      %p403 = scmp.eq.s32.totalorder %s402, 0
      %s405 = sadd.s32 %s404, 1
      %s406 = scalar_select %p403, %s404, %s405
      %p409 = pneg %p403
      %p410 = scmp.eq.s32.totalorder %s28, 3
      %p411 = por %p409, %p410
      %p412 = scmp.ne.s32.totalorder %s404, %s407
      %p413 = scmp.eq.s32.totalorder %s28, 0
      %p414 = por %p412, %p413
      %p415 = scmp.ne.s32.totalorder %s404, %s407
      %p416 = scmp.eq.s32.totalorder %s33, 3
      %p417 = por %p415, %p416
      %p418 = scmp.ne.s32.totalorder %s407, %s408
      %p419 = scmp.eq.s32.totalorder %s33, 0
      %p420 = por %p418, %p419
      %p421 = scmp.ne.s32.totalorder %s407, %s408
      %p422 = scmp.eq.s32.totalorder %s34, 3
      %p423 = por %p421, %p422
      %p425 = scmp.ne.s32.totalorder %s408, %s424
      %p426 = scmp.eq.s32.totalorder %s34, 0
      %p427 = por %p425, %p426
      %s428 = ssub.s32 %s36, %s43
      %p429 = scmp.eq.s32.totalorder %s428, 0
      %s431 = sadd.s32 %s430, 1
      %s432 = scalar_select %p429, %s430, %s431
      %p435 = pneg %p429
      %p436 = scmp.eq.s32.totalorder %s28, 3
      %p437 = por %p435, %p436
      %p438 = scmp.ne.s32.totalorder %s430, %s433
      %p439 = scmp.eq.s32.totalorder %s28, 0
      %p440 = por %p438, %p439
      %p441 = scmp.ne.s32.totalorder %s430, %s433
      %p442 = scmp.eq.s32.totalorder %s33, 3
      %p443 = por %p441, %p442
      %p444 = scmp.ne.s32.totalorder %s433, %s434
      %p445 = scmp.eq.s32.totalorder %s33, 0
      %p446 = por %p444, %p445
      %p447 = scmp.ne.s32.totalorder %s433, %s434
      %p448 = scmp.eq.s32.totalorder %s34, 3
      %p449 = por %p447, %p448
      %p451 = scmp.ne.s32.totalorder %s434, %s450
      %p452 = scmp.eq.s32.totalorder %s34, 0
      %p453 = por %p451, %p452
      %s455 = sadd.s32 %s454, 1
      %p458 = scmp.eq.s32.totalorder %s28, 3
      %p459 = scmp.ne.s32.totalorder %s454, %s456
      %p460 = scmp.eq.s32.totalorder %s28, 0
      %p461 = por %p459, %p460
      %p462 = scmp.ne.s32.totalorder %s454, %s456
      %p463 = scmp.eq.s32.totalorder %s33, 3
      %p464 = por %p462, %p463
      %p465 = scmp.ne.s32.totalorder %s456, %s457
      %p466 = scmp.eq.s32.totalorder %s33, 0
      %p467 = por %p465, %p466
      %p468 = scmp.ne.s32.totalorder %s456, %s457
      %p469 = scmp.eq.s32.totalorder %s34, 3
      %p470 = por %p468, %p469
      %p472 = scmp.ne.s32.totalorder %s457, %s471
      %p473 = scmp.eq.s32.totalorder %s34, 0
      %p474 = por %p472, %p473
      %s476 = sadd.s32 %s475, 1
      %p479 = scmp.eq.s32.totalorder %s28, 3
      %p480 = scmp.ne.s32.totalorder %s475, %s477
      %p481 = scmp.eq.s32.totalorder %s28, 0
      %p482 = por %p480, %p481
      %p483 = scmp.ne.s32.totalorder %s475, %s477
      %p484 = scmp.eq.s32.totalorder %s33, 3
      %p485 = por %p483, %p484
      %p486 = scmp.ne.s32.totalorder %s477, %s478
      %p487 = scmp.eq.s32.totalorder %s33, 0
      %p488 = por %p486, %p487
      %p489 = scmp.ne.s32.totalorder %s477, %s478
      %p490 = scmp.eq.s32.totalorder %s34, 3
      %p491 = por %p489, %p490
      %p493 = scmp.ne.s32.totalorder %s478, %s492
      %p494 = scmp.eq.s32.totalorder %s34, 0
      %p495 = por %p493, %p494
      %s496 = ssub.s32 %s35, %s47
      %p497 = scmp.eq.s32.totalorder %s496, 0
      %s499 = sadd.s32 %s498, 1
      %s500 = scalar_select %p497, %s498, %s499
      %p503 = pneg %p497
      %p504 = scmp.eq.s32.totalorder %s28, 3
      %p505 = por %p503, %p504
      %p506 = scmp.ne.s32.totalorder %s498, %s501
      %p507 = scmp.eq.s32.totalorder %s28, 0
      %p508 = por %p506, %p507
      %p509 = scmp.ne.s32.totalorder %s498, %s501
      %p510 = scmp.eq.s32.totalorder %s33, 3
      %p511 = por %p509, %p510
      %p512 = scmp.ne.s32.totalorder %s501, %s502
      %p513 = scmp.eq.s32.totalorder %s33, 0
      %p514 = por %p512, %p513
      %p515 = scmp.ne.s32.totalorder %s501, %s502
      %p516 = scmp.eq.s32.totalorder %s34, 3
      %p517 = por %p515, %p516
      %p519 = scmp.ne.s32.totalorder %s502, %s518
      %p520 = scmp.eq.s32.totalorder %s34, 0
      %p521 = por %p519, %p520
      %p522 = scmp.le.s32.totalorder 1, %s28
      %p523 = scmp.lt.s32.totalorder %s28, 5
      %p524 = pnand %p522, %p523
      %p525 = pneg %p524
      // Predicated region
      $region9: #{tpu_custom_call.1} parent=5 // pred_check
        _
      $region10: #{tpu_custom_call.1} parent=5 // pred_check_branch
        %527 = sbr.rel (%p524) target = $region12
      $region11: #{tpu_custom_call.1} parent=5 // pred_region
        %s528 = ssub.s32 %s28, 1
        // Predicated region
        $region13: #{tpu_custom_call.1} parent=11 // pred_check
          %p529 = pneg %p113
        $region14: #{tpu_custom_call.1} parent=11 // pred_check_branch
          %531 = sbr.rel (%p529) target = $region16
        $region15: #{tpu_custom_call.1} parent=11 // pred_region
          %s533 = ssub.s32 16, 16
          %534 = vsyncadd [#allocation6], %s533
          %s536 = sshll.u32 [#allocation5], 4
          %s537 = int_to_ptr.vmem [resolvable:$true] %s536
          %539 = dma.hbm_to_vmem [thread:$0]  %s2, 16, %s537, [#allocation6]
        $region16: #{tpu_custom_call.1} parent=11 // pred_fallthru
          _
        // Predicated region
        $region17: #{tpu_custom_call.1} parent=11 // pred_check
          %p540 = pneg %p134
        $region18: #{tpu_custom_call.1} parent=11 // pred_check_branch
          %542 = sbr.rel (%p540) target = $region20
        $region19: #{tpu_custom_call.1} parent=11 // pred_region
          _
        $region20: #{tpu_custom_call.1} parent=11 // pred_fallthru
          _
        // Predicated region
        $region21: #{tpu_custom_call.1} parent=11 // pred_check
          %p543 = pneg %p467
        $region22: #{tpu_custom_call.1} parent=11 // pred_check_branch
          %545 = sbr.rel (%p543) target = $region24
        $region23: #{tpu_custom_call.1} parent=11 // pred_region
          _
        $region24: #{tpu_custom_call.1} parent=11 // pred_fallthru
          _
        // Predicated region
        $region25: #{tpu_custom_call.1} parent=11 // pred_check
          %p546 = pneg %p488
        $region26: #{tpu_custom_call.1} parent=11 // pred_check_branch
          %548 = sbr.rel (%p546) target = $region28
        $region27: #{tpu_custom_call.1} parent=11 // pred_region
          _
        $region28: #{tpu_custom_call.1} parent=11 // pred_fallthru
          _
      $region12: #{tpu_custom_call.1} parent=5 // pred_fallthru
        _
      %p549 = scmp.lt.s32.totalorder %s28, 4
      // Predicated region
      $region29: #{tpu_custom_call.1} parent=5 // pred_check
        %p550 = pneg %p549
      $region30: #{tpu_custom_call.1} parent=5 // pred_check_branch
        %552 = sbr.rel (%p550) target = $region32
      $region31: #{tpu_custom_call.1} parent=5 // pred_region
        // Predicated region
        $region33: #{tpu_custom_call.1} parent=31 // pred_check
          %p553 = pneg %p60
        $region34: #{tpu_custom_call.1} parent=31 // pred_check_branch
          %555 = sbr.rel (%p553) target = $region36
        $region35: #{tpu_custom_call.1} parent=31 // pred_region
          %p556 = scmp.lt.s32.totalorder %s35, 1
          %s557 = scalar_select %p556, %s35, 1
          %s558 = smul.addr %s557, 4
          %s559 = scalar_lea.vmem %s0, %s558
        $region36: #{tpu_custom_call.1} parent=31 // pred_fallthru
          _
        // Predicated region
        $region37: #{tpu_custom_call.1} parent=31 // pred_check
          %p560 = pneg %p86
        $region38: #{tpu_custom_call.1} parent=31 // pred_check_branch
          %562 = sbr.rel (%p560) target = $region40
        $region39: #{tpu_custom_call.1} parent=31 // pred_region
          %p563 = scmp.lt.s32.totalorder %s35, 1
          %s564 = scalar_select %p563, %s35, 1
          %s565 = scalar_lea.vmem %s1, %s564
        $region40: #{tpu_custom_call.1} parent=31 // pred_fallthru
          _
        // Predicated region
        $region41: #{tpu_custom_call.1} parent=31 // pred_check
          %p566 = pneg %p154
        $region42: #{tpu_custom_call.1} parent=31 // pred_check_branch
          %568 = sbr.rel (%p566) target = $region44
        $region43: #{tpu_custom_call.1} parent=31 // pred_region
          %p569 = scmp.lt.s32.totalorder %s36, 1
          %s570 = scalar_select %p569, %s36, 1
          %s571 = smul.addr %s570, 4
          %s572 = smul.addr %s571, 4
          %s573 = scalar_lea.vmem %s4, %s572
        $region44: #{tpu_custom_call.1} parent=31 // pred_fallthru
          _
        // Predicated region
        $region45: #{tpu_custom_call.1} parent=31 // pred_check
          %p574 = pneg %p180
        $region46: #{tpu_custom_call.1} parent=31 // pred_check_branch
          %576 = sbr.rel (%p574) target = $region48
        $region47: #{tpu_custom_call.1} parent=31 // pred_region
          %p577 = scmp.lt.s32.totalorder %s36, 1
          %s578 = scalar_select %p577, %s36, 1
          %s579 = scalar_lea.vmem %s5, %s578
        $region48: #{tpu_custom_call.1} parent=31 // pred_fallthru
          _
        // Predicated region
        $region49: #{tpu_custom_call.1} parent=31 // pred_check
          %p580 = pneg %p206
        $region50: #{tpu_custom_call.1} parent=31 // pred_check_branch
          %582 = sbr.rel (%p580) target = $region52
        $region51: #{tpu_custom_call.1} parent=31 // pred_region
          %p583 = scmp.lt.s32.totalorder %s36, 1
          %s584 = scalar_select %p583, %s36, 1
          %s585 = smul.addr %s584, 4
          %s586 = smul.addr %s585, 4
          %s587 = scalar_lea.vmem %s6, %s586
        $region52: #{tpu_custom_call.1} parent=31 // pred_fallthru
          _
        // Predicated region
        $region53: #{tpu_custom_call.1} parent=31 // pred_check
          %p588 = pneg %p232
        $region54: #{tpu_custom_call.1} parent=31 // pred_check_branch
          %590 = sbr.rel (%p588) target = $region56
        $region55: #{tpu_custom_call.1} parent=31 // pred_region
          %p591 = scmp.lt.s32.totalorder %s36, 1
          %s592 = scalar_select %p591, %s36, 1
          %s593 = scalar_lea.vmem %s7, %s592
        $region56: #{tpu_custom_call.1} parent=31 // pred_fallthru
          _
        // Predicated region
        $region57: #{tpu_custom_call.1} parent=31 // pred_check
          %p594 = pneg %p258
        $region58: #{tpu_custom_call.1} parent=31 // pred_check_branch
          %596 = sbr.rel (%p594) target = $region60
        $region59: #{tpu_custom_call.1} parent=31 // pred_region
          %p597 = scmp.lt.s32.totalorder %s36, 1
          %s598 = scalar_select %p597, %s36, 1
          %s599 = scalar_lea.vmem %s8, %s598
        $region60: #{tpu_custom_call.1} parent=31 // pred_fallthru
          _
        // Predicated region
        $region61: #{tpu_custom_call.1} parent=31 // pred_check
          %p600 = pneg %p284
        $region62: #{tpu_custom_call.1} parent=31 // pred_check_branch
          %602 = sbr.rel (%p600) target = $region64
        $region63: #{tpu_custom_call.1} parent=31 // pred_region
          %p603 = scmp.lt.s32.totalorder %s36, 1
          %s604 = scalar_select %p603, %s36, 1
          %s605 = scalar_lea.vmem %s9, %s604
        $region64: #{tpu_custom_call.1} parent=31 // pred_fallthru
          _
        // Predicated region
        $region65: #{tpu_custom_call.1} parent=31 // pred_check
          %p606 = pneg %p310
        $region66: #{tpu_custom_call.1} parent=31 // pred_check_branch
          %608 = sbr.rel (%p606) target = $region68
        $region67: #{tpu_custom_call.1} parent=31 // pred_region
          %p609 = scmp.lt.s32.totalorder %s36, 1
          %s610 = scalar_select %p609, %s36, 1
          %s611 = smul.addr %s610, 4
          %s612 = smul.addr %s611, 4
          %s613 = scalar_lea.vmem %s10, %s612
        $region68: #{tpu_custom_call.1} parent=31 // pred_fallthru
          _
        // Predicated region
        $region69: #{tpu_custom_call.1} parent=31 // pred_check
          %p614 = pneg %p336
        $region70: #{tpu_custom_call.1} parent=31 // pred_check_branch
          %616 = sbr.rel (%p614) target = $region72
        $region71: #{tpu_custom_call.1} parent=31 // pred_region
          %p617 = scmp.lt.s32.totalorder %s36, 1
          %s618 = scalar_select %p617, %s36, 1
          %s619 = scalar_lea.vmem %s11, %s618
        $region72: #{tpu_custom_call.1} parent=31 // pred_fallthru
          _
        // Predicated region
        $region73: #{tpu_custom_call.1} parent=31 // pred_check
          %p620 = pneg %p362
        $region74: #{tpu_custom_call.1} parent=31 // pred_check_branch
          %622 = sbr.rel (%p620) target = $region76
        $region75: #{tpu_custom_call.1} parent=31 // pred_region
          %p623 = scmp.lt.s32.totalorder %s36, 1
          %s624 = scalar_select %p623, %s36, 1
          %s625 = smul.addr %s624, 8
          %s626 = smul.addr %s625, 4
          %s627 = scalar_lea.vmem %s12, %s626
        $region76: #{tpu_custom_call.1} parent=31 // pred_fallthru
          _
        // Predicated region
        $region77: #{tpu_custom_call.1} parent=31 // pred_check
          %p628 = pneg %p388
        $region78: #{tpu_custom_call.1} parent=31 // pred_check_branch
          %630 = sbr.rel (%p628) target = $region80
        $region79: #{tpu_custom_call.1} parent=31 // pred_region
          %p631 = scmp.lt.s32.totalorder %s36, 1
          %s632 = scalar_select %p631, %s36, 1
          %s633 = scalar_lea.vmem %s13, %s632
        $region80: #{tpu_custom_call.1} parent=31 // pred_fallthru
          _
        // Predicated region
        $region81: #{tpu_custom_call.1} parent=31 // pred_check
          %p634 = pneg %p414
        $region82: #{tpu_custom_call.1} parent=31 // pred_check_branch
          %636 = sbr.rel (%p634) target = $region84
        $region83: #{tpu_custom_call.1} parent=31 // pred_region
          %p637 = scmp.lt.s32.totalorder %s36, 1
          %s638 = scalar_select %p637, %s36, 1
          %s639 = scalar_lea.vmem %s14, %s638
        $region84: #{tpu_custom_call.1} parent=31 // pred_fallthru
          _
        // Predicated region
        $region85: #{tpu_custom_call.1} parent=31 // pred_check
          %p640 = pneg %p440
        $region86: #{tpu_custom_call.1} parent=31 // pred_check_branch
          %642 = sbr.rel (%p640) target = $region88
        $region87: #{tpu_custom_call.1} parent=31 // pred_region
          %p643 = scmp.lt.s32.totalorder %s36, 1
          %s644 = scalar_select %p643, %s36, 1
          %s645 = scalar_lea.vmem %s15, %s644
        $region88: #{tpu_custom_call.1} parent=31 // pred_fallthru
          _
      $region32: #{tpu_custom_call.1} parent=5 // pred_fallthru
        _
      %p646 = scmp.le.s32.totalorder 1, %s28
      %p647 = scmp.lt.s32.totalorder %s28, 5
      %p648 = pnand %p646, %p647
      %p649 = pneg %p648
      // Predicated region
      $region89: #{tpu_custom_call.1} parent=5 // pred_check
        _
      $region90: #{tpu_custom_call.1} parent=5 // pred_check_branch
        %651 = sbr.rel (%p648) target = $region92
      $region91: #{tpu_custom_call.1} parent=5 // pred_region
        %s652 = ssub.s32 %s28, 1
        // Predicated region
        $region93: #{tpu_custom_call.1} parent=91 // pred_check
          %p653 = pneg %p113
        $region94: #{tpu_custom_call.1} parent=91 // pred_check_branch
          %655 = sbr.rel (%p653) target = $region96
        $region95: #{tpu_custom_call.1} parent=91 // pred_region
          %656 = dma.done [#allocation6], 16
        $region96: #{tpu_custom_call.1} parent=91 // pred_fallthru
          _
        %p657 = scmp.lt.s32.totalorder %s37, 1
        %s658 = scalar_select %p657, %s37, 1
        %s659 = smul.addr %s658, 4
        %s660 = scalar_lea.vmem %s0, %s659
        %p661 = pneg %p66
        %p662 = pneg %p63
        %p663 = scmp.lt.s32.totalorder %s37, 1
        %s664 = scalar_select %p663, %s37, 1
        %s665 = scalar_lea.vmem %s1, %s664
        %p666 = pneg %p92
        %p667 = pneg %p89
        %p668 = pneg %p113
        %p669 = pneg %p110
        %p670 = pneg %p134
        %p671 = pneg %p131
        %p672 = scmp.lt.s32.totalorder %s38, 1
        %s673 = scalar_select %p672, %s38, 1
        %s674 = smul.addr %s673, 4
        %s675 = smul.addr %s674, 4
        %s676 = scalar_lea.vmem %s4, %s675
        %p677 = pneg %p160
        %p678 = pneg %p157
        %p679 = scmp.lt.s32.totalorder %s38, 1
        %s680 = scalar_select %p679, %s38, 1
        %s681 = scalar_lea.vmem %s5, %s680
        %p682 = pneg %p186
        %p683 = pneg %p183
        %p684 = scmp.lt.s32.totalorder %s38, 1
        %s685 = scalar_select %p684, %s38, 1
        %s686 = smul.addr %s685, 4
        %s687 = smul.addr %s686, 4
        %s688 = scalar_lea.vmem %s6, %s687
        %p689 = pneg %p212
        %p690 = pneg %p209
        %p691 = scmp.lt.s32.totalorder %s38, 1
        %s692 = scalar_select %p691, %s38, 1
        %s693 = scalar_lea.vmem %s7, %s692
        %p694 = pneg %p238
        %p695 = pneg %p235
        %p696 = scmp.lt.s32.totalorder %s38, 1
        %s697 = scalar_select %p696, %s38, 1
        %s698 = scalar_lea.vmem %s8, %s697
        %p699 = pneg %p264
        %p700 = pneg %p261
        %p701 = scmp.lt.s32.totalorder %s38, 1
        %s702 = scalar_select %p701, %s38, 1
        %s703 = scalar_lea.vmem %s9, %s702
        %p704 = pneg %p290
        %p705 = pneg %p287
        %p706 = scmp.lt.s32.totalorder %s38, 1
        %s707 = scalar_select %p706, %s38, 1
        %s708 = smul.addr %s707, 4
        %s709 = smul.addr %s708, 4
        %s710 = scalar_lea.vmem %s10, %s709
        %p711 = pneg %p316
        %p712 = pneg %p313
        %p713 = scmp.lt.s32.totalorder %s38, 1
        %s714 = scalar_select %p713, %s38, 1
        %s715 = scalar_lea.vmem %s11, %s714
        %p716 = pneg %p342
        %p717 = pneg %p339
        %p718 = scmp.lt.s32.totalorder %s38, 1
        %s719 = scalar_select %p718, %s38, 1
        %s720 = smul.addr %s719, 8
        %s721 = smul.addr %s720, 4
        %s722 = scalar_lea.vmem %s12, %s721
        %p723 = pneg %p368
        %p724 = pneg %p365
        %p725 = scmp.lt.s32.totalorder %s38, 1
        %s726 = scalar_select %p725, %s38, 1
        %s727 = scalar_lea.vmem %s13, %s726
        %p728 = pneg %p394
        %p729 = pneg %p391
        %p730 = scmp.lt.s32.totalorder %s38, 1
        %s731 = scalar_select %p730, %s38, 1
        %s732 = scalar_lea.vmem %s14, %s731
        %p733 = pneg %p420
        %p734 = pneg %p417
        %p735 = scmp.lt.s32.totalorder %s38, 1
        %s736 = scalar_select %p735, %s38, 1
        %s737 = scalar_lea.vmem %s15, %s736
        %p738 = pneg %p446
        %p739 = pneg %p443
        %p740 = pneg %p467
        %p741 = pneg %p464
        %p742 = pneg %p488
        %p743 = pneg %p485
        %p744 = pneg %p514
        %p745 = pneg %p511
        %s746 = sand.u32 %s501, 1
        %s747 = scalar_lea.sflag [#allocation7], %s746
        %s748 = sand.u32 %s501, 1
        %s749 = scalar_lea.vmem [#allocation8], %s748
        %p750 = scmp.lt.s32.totalorder %s37, 1
        %s751 = scalar_select %p750, %s37, 1
        %s752 = smul.addr %s751, 4
        %s753 = scalar_lea.vmem %s0, %s752
        %p754 = scmp.lt.s32.totalorder %s37, 1
        %s755 = scalar_select %p754, %s37, 1
        %s756 = scalar_lea.vmem %s1, %s755
        %p757 = scmp.lt.s32.totalorder %s38, 1
        %s758 = scalar_select %p757, %s38, 1
        %s759 = smul.addr %s758, 4
        %s760 = smul.addr %s759, 4
        %s761 = scalar_lea.vmem %s4, %s760
        %p762 = scmp.lt.s32.totalorder %s38, 1
        %s763 = scalar_select %p762, %s38, 1
        %s764 = scalar_lea.vmem %s5, %s763
        %p765 = scmp.lt.s32.totalorder %s38, 1
        %s766 = scalar_select %p765, %s38, 1
        %s767 = smul.addr %s766, 4
        %s768 = smul.addr %s767, 4
        %s769 = scalar_lea.vmem %s6, %s768
        %p770 = scmp.lt.s32.totalorder %s38, 1
        %s771 = scalar_select %p770, %s38, 1
        %s772 = scalar_lea.vmem %s7, %s771
        %p773 = scmp.lt.s32.totalorder %s38, 1
        %s774 = scalar_select %p773, %s38, 1
        %s775 = scalar_lea.vmem %s8, %s774
        %p776 = scmp.lt.s32.totalorder %s38, 1
        %s777 = scalar_select %p776, %s38, 1
        %s778 = scalar_lea.vmem %s9, %s777
        %p779 = scmp.lt.s32.totalorder %s38, 1
        %s780 = scalar_select %p779, %s38, 1
        %s781 = smul.addr %s780, 4
        %s782 = smul.addr %s781, 4
        %s783 = scalar_lea.vmem %s10, %s782
        %p784 = scmp.lt.s32.totalorder %s38, 1
        %s785 = scalar_select %p784, %s38, 1
        %s786 = scalar_lea.vmem %s11, %s785
        %p787 = scmp.lt.s32.totalorder %s38, 1
        %s788 = scalar_select %p787, %s38, 1
        %s789 = smul.addr %s788, 8
        %s790 = smul.addr %s789, 4
        %s791 = scalar_lea.vmem %s12, %s790
        %p792 = scmp.lt.s32.totalorder %s38, 1
        %s793 = scalar_select %p792, %s38, 1
        %s794 = scalar_lea.vmem %s13, %s793
        %p795 = scmp.lt.s32.totalorder %s38, 1
        %s796 = scalar_select %p795, %s38, 1
        %s797 = scalar_lea.vmem %s14, %s796
        %p798 = scmp.lt.s32.totalorder %s38, 1
        %s799 = scalar_select %p798, %s38, 1
        %s800 = scalar_lea.vmem %s15, %s799
        %p802 = scmp.eq.s32.totalorder %s38, 0
        // Predicated region
        $region97: #{tpu_custom_call.1} parent=91 // pred_check
          %p803 = pneg %p802
        $region98: #{tpu_custom_call.1} parent=91 // pred_check_branch
          %805 = sbr.rel (%p803) target = $region100
        $region99: #{tpu_custom_call.1} parent=91 // pred_region
          %v806 = vld [vmem:[%s753] sm:$0xf]
          %v807 = vunpack.c.l.bf16 %v806
          %v808 = vld [vmem:[#allocation5] sm:$0x1]
          %v809 = vld [vmem:[%s3] sm:$0x1]
          %vm810 = vcmask 261120
          %v811 = vsel %vm810, %v807, 0.0
          %812 = vadd.xlane.f32.xlu0 %v811
          %v813 = vpop.xlane.xlu0 %812
          %v814 = vrcp.pop 32.0
          %v815 = vmul.f32 %v813, %v814
          %v816 = vsub.f32 %v807, %v815
          %v817 = vmul.f32 %v816, %v816
          %v818 = vsel %vm810, %v817, 0.0
          %819 = vadd.xlane.f32.xlu0 %v818
          %v820 = vpop.xlane.xlu0 %819
          %v821 = vmul.f32 %v820, %v814
          %v822 = vadd.f32 %v821, 1e-12
          %v823 = vrsqrt.pop %v822
          %v824 = vmul.f32 %v816, %v823
          %v826 = vlaneseq
          %v827 = vshrl.u32 %v826, 7
          %v828 = vsub.s32 0, %v827
          %v829 = vrot.slane %v808, %v828
          %v831 = vmul.f32 %v824, %v829
          %v833 = vlaneseq
          %v834 = vshrl.u32 %v833, 7
          %v835 = vsub.s32 0, %v834
          %v836 = vrot.slane %v809, %v835
          %v838 = vadd.f32 %v831, %v836
          %839 = vst.msk [vmem:[#allocation2] sm:$0xff] %vm810, %v838
        $region100: #{tpu_custom_call.1} parent=91 // pred_fallthru
          _
        %v840 = vld [vmem:[#allocation2] sm:$0xff]
        %v841 = vld [vmem:[%s756] sm:$0x1]
        %v842 = vsub.f32 1.0, %v841
        %v843 = vmul.f32 %v842, -1e+09
        %v844 = vpack.c.bf16 %v840, %v840
        %v845 = vld [vmem:[%s761] sm:$0xf]
        %v846 = vld [vmem:[%s761 + $0x4] sm:$0xf]
        %v847 = vld [vmem:[%s761 + $0x8] sm:$0xf]
        %v848 = vld [vmem:[%s761 + $0xc] sm:$0xf]
        %v849 = vld [vmem:[%s764] sm:$0x1]
        %v851 = vlaneseq
        %v852 = vshrl.u32 %v851, 7
        %v853 = vsub.s32 0, %v852
        %v854 = vrot.slane %v849, %v853
        %v860 = vunpack.c.l.b16 %v845
        %v861 = vunpack.c.l.b16 %v846
        %v862 = vunpack.c.l.b16 %v847
        %v863 = vunpack.c.l.b16 %v848
        %v864 = vpack.c.b16 %v861, %v860
        %v865 = vpack.c.b16 %v863, %v862
        %vm868 = vcmask 261120
        %v870 = vsel %vm868, %v844, 0
        %872 = vmatprep.subr.bf16.mxu0 0
        %873 = vmatpush1.bf16.msra.mxu0 %v864
        %874 = vmatprep.subr.bf16.mxu0 0
        %875 = vmatpush1.bf16.msra.mxu0 %v865
        %876 = vmatprep.subr.bf16.mxu0 0
        %877 = vmatpush1.bf16.msra.mxu0 0
        %878 = vmatprep.subr.bf16.mxu0 0
        %879 = vmatpush1.bf16.msra.mxu0 0
        %880 = vmatprep.subr.bf16.mxu0 0
        %881 = vmatpush1.bf16.msra.mxu0 0
        %882 = vmatprep.subr.bf16.mxu0 0
        %883 = vmatpush1.bf16.msra.mxu0 0
        %884 = vmatprep.subr.bf16.mxu0 0
        %885 = vmatpush1.bf16.msra.mxu0 0
        %886 = vmatprep.subr.bf16.mxu0 0
        %887 = vmatpush1.bf16.msra.mxu0 0
        %888 = vmatprep.subr.bf16.mxu0 0
        %889 = vmatpush1.bf16.msra.mxu0 0
        %890 = vmatprep.subr.bf16.mxu0 0
        %891 = vmatpush1.bf16.msra.mxu0 0
        %892 = vmatprep.subr.bf16.mxu0 0
        %893 = vmatpush1.bf16.msra.mxu0 0
        %894 = vmatprep.subr.bf16.mxu0 0
        %895 = vmatpush1.bf16.msra.mxu0 0
        %896 = vmatprep.subr.bf16.mxu0 0
        %897 = vmatpush1.bf16.msra.mxu0 0
        %898 = vmatprep.subr.bf16.mxu0 0
        %899 = vmatpush1.bf16.msra.mxu0 0
        %900 = vmatprep.subr.bf16.mxu0 0
        %901 = vmatpush1.bf16.msra.mxu0 0
        %902 = vmatprep.subr.bf16.mxu0 0
        %903 = vmatpush1.bf16.msra.mxu0 0
        %904 = vmatprep.mubr.bf16.mxu0 0
        %905 = vmatmul.mubr.bf16.gmra.mrb[0].mxu0 %v870
        %v906 = vpop.f32.mrb[0].mxu0
        %v907 = vadd.f32 %v854, %v906
        %v908 = vpop.f32.mrb[0].mxu0
        %v909 = vpop.f32.mrb[0].mxu0
        %v910 = vpop.f32.mrb[0].mxu0
        %911 = vdwg.mxu0
        %v912 = vpack.c.bf16 %v907, %v907
        %914 = vrot.lane.b32.xlu0 %v912, 96
        %v915 = vpop.permute.xlu0 %914
        %vm916 = vcmask 64512
        %v918 = vsel %vm916, %v912, 0
        %v921 = vsel %vm916, %v915, 0
        %923 = vmatprep.subr.bf16.mxu0 0
        %924 = vmatpush1.bf16.xpose.msra.mxu0 %v921
        %925 = vmatprep.subr.bf16.mxu0 0
        %926 = vmatpush1.bf16.xpose.msra.mxu0 0
        %927 = vmatprep.subr.bf16.mxu0 0
        %928 = vmatpush1.bf16.xpose.msra.mxu0 0
        %929 = vmatprep.subr.bf16.mxu0 0
        %930 = vmatpush1.bf16.xpose.msra.mxu0 0
        %931 = vmatprep.subr.bf16.mxu0 0
        %932 = vmatpush1.bf16.xpose.msra.mxu0 0
        %933 = vmatprep.subr.bf16.mxu0 0
        %934 = vmatpush1.bf16.xpose.msra.mxu0 0
        %935 = vmatprep.subr.bf16.mxu0 0
        %936 = vmatpush1.bf16.xpose.msra.mxu0 0
        %937 = vmatprep.subr.bf16.mxu0 0
        %938 = vmatpush1.bf16.xpose.msra.mxu0 0
        %939 = vmatprep.subr.bf16.mxu0 0
        %940 = vmatpush1.bf16.xpose.msra.mxu0 0
        %941 = vmatprep.subr.bf16.mxu0 0
        %942 = vmatpush1.bf16.xpose.msra.mxu0 0
        %943 = vmatprep.subr.bf16.mxu0 0
        %944 = vmatpush1.bf16.xpose.msra.mxu0 0
        %945 = vmatprep.subr.bf16.mxu0 0
        %946 = vmatpush1.bf16.xpose.msra.mxu0 0
        %947 = vmatprep.subr.bf16.mxu0 0
        %948 = vmatpush1.bf16.xpose.msra.mxu0 0
        %949 = vmatprep.subr.bf16.mxu0 0
        %950 = vmatpush1.bf16.xpose.msra.mxu0 0
        %951 = vmatprep.subr.bf16.mxu0 0
        %952 = vmatpush1.bf16.xpose.msra.mxu0 0
        %953 = vmatprep.subr.bf16.mxu0 0
        %954 = vmatpush1.bf16.xpose.msra.mxu0 0
        %955 = vmatprep.mubr.bf16.mxu0 0
        %956 = vmatmul.mubr.bf16.gmra.mrb[0].mxu0 %v918
        %v957 = vpop.f32.mrb[0].mxu0
        %v958 = vadd.f32 0.0, %v957
        %v959 = vpop.f32.mrb[0].mxu0
        %v960 = vpop.f32.mrb[0].mxu0
        %v961 = vpop.f32.mrb[0].mxu0
        %962 = vdwg.mxu0
        %963 = vst.msk [vmem:[#allocation3] sm:$0xff] %vm916, %v958
        %964 = vrot.lane.b32.xlu0 %v912, 120
        %v965 = vpop.permute.xlu0 %964
        %966 = vrot.lane.b32.xlu0 %v912, 88
        %v967 = vpop.permute.xlu0 %966
        %v969 = vsel %vm916, %v965, 0
        %v972 = vsel %vm916, %v967, 0
        %974 = vmatprep.subr.bf16.mxu0 0
        %975 = vmatpush1.bf16.xpose.msra.mxu0 %v972
        %976 = vmatprep.subr.bf16.mxu0 0
        %977 = vmatpush1.bf16.xpose.msra.mxu0 0
        %978 = vmatprep.subr.bf16.mxu0 0
        %979 = vmatpush1.bf16.xpose.msra.mxu0 0
        %980 = vmatprep.subr.bf16.mxu0 0
        %981 = vmatpush1.bf16.xpose.msra.mxu0 0
        %982 = vmatprep.subr.bf16.mxu0 0
        %983 = vmatpush1.bf16.xpose.msra.mxu0 0
        %984 = vmatprep.subr.bf16.mxu0 0
        %985 = vmatpush1.bf16.xpose.msra.mxu0 0
        %986 = vmatprep.subr.bf16.mxu0 0
        %987 = vmatpush1.bf16.xpose.msra.mxu0 0
        %988 = vmatprep.subr.bf16.mxu0 0
        %989 = vmatpush1.bf16.xpose.msra.mxu0 0
        %990 = vmatprep.subr.bf16.mxu0 0
        %991 = vmatpush1.bf16.xpose.msra.mxu0 0
        %992 = vmatprep.subr.bf16.mxu0 0
        %993 = vmatpush1.bf16.xpose.msra.mxu0 0
        %994 = vmatprep.subr.bf16.mxu0 0
        %995 = vmatpush1.bf16.xpose.msra.mxu0 0
        %996 = vmatprep.subr.bf16.mxu0 0
        %997 = vmatpush1.bf16.xpose.msra.mxu0 0
        %998 = vmatprep.subr.bf16.mxu0 0
        %999 = vmatpush1.bf16.xpose.msra.mxu0 0
        %1000 = vmatprep.subr.bf16.mxu0 0
        %1001 = vmatpush1.bf16.xpose.msra.mxu0 0
        %1002 = vmatprep.subr.bf16.mxu0 0
        %1003 = vmatpush1.bf16.xpose.msra.mxu0 0
        %1004 = vmatprep.subr.bf16.mxu0 0
        %1005 = vmatpush1.bf16.xpose.msra.mxu0 0
        %1006 = vmatprep.mubr.bf16.mxu0 0
        %1007 = vmatmul.mubr.bf16.gmra.mrb[0].mxu0 %v969
        %v1008 = vpop.f32.mrb[0].mxu0
        %v1009 = vadd.f32 0.0, %v1008
        %v1010 = vpop.f32.mrb[0].mxu0
        %v1011 = vpop.f32.mrb[0].mxu0
        %v1012 = vpop.f32.mrb[0].mxu0
        %1013 = vdwg.mxu0
        %1014 = vst.msk [vmem:[#allocation3 + $0x8] sm:$0xff] %vm916, %v1009
        %1015 = vrot.lane.b32.xlu0 %v912, 112
        %v1016 = vpop.permute.xlu0 %1015
        %1017 = vrot.lane.b32.xlu0 %v912, 80
        %v1018 = vpop.permute.xlu0 %1017
        %v1020 = vsel %vm916, %v1016, 0
        %v1023 = vsel %vm916, %v1018, 0
        %1025 = vmatprep.subr.bf16.mxu0 0
        %1026 = vmatpush1.bf16.xpose.msra.mxu0 %v1023
        %1027 = vmatprep.subr.bf16.mxu0 0
        %1028 = vmatpush1.bf16.xpose.msra.mxu0 0
        %1029 = vmatprep.subr.bf16.mxu0 0
        %1030 = vmatpush1.bf16.xpose.msra.mxu0 0
        %1031 = vmatprep.subr.bf16.mxu0 0
        %1032 = vmatpush1.bf16.xpose.msra.mxu0 0
        %1033 = vmatprep.subr.bf16.mxu0 0
        %1034 = vmatpush1.bf16.xpose.msra.mxu0 0
        %1035 = vmatprep.subr.bf16.mxu0 0
        %1036 = vmatpush1.bf16.xpose.msra.mxu0 0
        %1037 = vmatprep.subr.bf16.mxu0 0
        %1038 = vmatpush1.bf16.xpose.msra.mxu0 0
        %1039 = vmatprep.subr.bf16.mxu0 0
        %1040 = vmatpush1.bf16.xpose.msra.mxu0 0
        %1041 = vmatprep.subr.bf16.mxu0 0
        %1042 = vmatpush1.bf16.xpose.msra.mxu0 0
        %1043 = vmatprep.subr.bf16.mxu0 0
        %1044 = vmatpush1.bf16.xpose.msra.mxu0 0
        %1045 = vmatprep.subr.bf16.mxu0 0
        %1046 = vmatpush1.bf16.xpose.msra.mxu0 0
        %1047 = vmatprep.subr.bf16.mxu0 0
        %1048 = vmatpush1.bf16.xpose.msra.mxu0 0
        %1049 = vmatprep.subr.bf16.mxu0 0
        %1050 = vmatpush1.bf16.xpose.msra.mxu0 0
        %1051 = vmatprep.subr.bf16.mxu0 0
        %1052 = vmatpush1.bf16.xpose.msra.mxu0 0
        %1053 = vmatprep.subr.bf16.mxu0 0
        %1054 = vmatpush1.bf16.xpose.msra.mxu0 0
        %1055 = vmatprep.subr.bf16.mxu0 0
        %1056 = vmatpush1.bf16.xpose.msra.mxu0 0
        %1057 = vmatprep.mubr.bf16.mxu0 0
        %1058 = vmatmul.mubr.bf16.gmra.mrb[0].mxu0 %v1020
        %v1059 = vpop.f32.mrb[0].mxu0
        %v1060 = vadd.f32 0.0, %v1059
        %v1061 = vpop.f32.mrb[0].mxu0
        %v1062 = vpop.f32.mrb[0].mxu0
        %v1063 = vpop.f32.mrb[0].mxu0
        %1064 = vdwg.mxu0
        %1065 = vst.msk [vmem:[#allocation3 + $0x10] sm:$0xff] %vm916, %v1060
        %1066 = vrot.lane.b32.xlu0 %v912, 104
        %v1067 = vpop.permute.xlu0 %1066
        %1068 = vrot.lane.b32.xlu0 %v912, 72
        %v1069 = vpop.permute.xlu0 %1068
        %v1071 = vsel %vm916, %v1067, 0
        %v1074 = vsel %vm916, %v1069, 0
        %1076 = vmatprep.subr.bf16.mxu0 0
        %1077 = vmatpush1.bf16.xpose.msra.mxu0 %v1074
        %1078 = vmatprep.subr.bf16.mxu0 0
        %1079 = vmatpush1.bf16.xpose.msra.mxu0 0
        %1080 = vmatprep.subr.bf16.mxu0 0
        %1081 = vmatpush1.bf16.xpose.msra.mxu0 0
        %1082 = vmatprep.subr.bf16.mxu0 0
        %1083 = vmatpush1.bf16.xpose.msra.mxu0 0
        %1084 = vmatprep.subr.bf16.mxu0 0
        %1085 = vmatpush1.bf16.xpose.msra.mxu0 0
        %1086 = vmatprep.subr.bf16.mxu0 0
        %1087 = vmatpush1.bf16.xpose.msra.mxu0 0
        %1088 = vmatprep.subr.bf16.mxu0 0
        %1089 = vmatpush1.bf16.xpose.msra.mxu0 0
        %1090 = vmatprep.subr.bf16.mxu0 0
        %1091 = vmatpush1.bf16.xpose.msra.mxu0 0
        %1092 = vmatprep.subr.bf16.mxu0 0
        %1093 = vmatpush1.bf16.xpose.msra.mxu0 0
        %1094 = vmatprep.subr.bf16.mxu0 0
        %1095 = vmatpush1.bf16.xpose.msra.mxu0 0
        %1096 = vmatprep.subr.bf16.mxu0 0
        %1097 = vmatpush1.bf16.xpose.msra.mxu0 0
        %1098 = vmatprep.subr.bf16.mxu0 0
        %1099 = vmatpush1.bf16.xpose.msra.mxu0 0
        %1100 = vmatprep.subr.bf16.mxu0 0
        %1101 = vmatpush1.bf16.xpose.msra.mxu0 0
        %1102 = vmatprep.subr.bf16.mxu0 0
        %1103 = vmatpush1.bf16.xpose.msra.mxu0 0
        %1104 = vmatprep.subr.bf16.mxu0 0
        %1105 = vmatpush1.bf16.xpose.msra.mxu0 0
        %1106 = vmatprep.subr.bf16.mxu0 0
        %1107 = vmatpush1.bf16.xpose.msra.mxu0 0
        %1108 = vmatprep.mubr.bf16.mxu0 0
        %1109 = vmatmul.mubr.bf16.gmra.mrb[0].mxu0 %v1071
        %v1110 = vpop.f32.mrb[0].mxu0
        %v1111 = vadd.f32 0.0, %v1110
        %v1112 = vpop.f32.mrb[0].mxu0
        %v1113 = vpop.f32.mrb[0].mxu0
        %v1114 = vpop.f32.mrb[0].mxu0
        %1115 = vdwg.mxu0
        %1116 = vst.msk [vmem:[#allocation3 + $0x18] sm:$0xff] %vm916, %v1111
        %v1117 = vld [vmem:[#allocation3] sm:$0xff]
        %v1118 = vld [vmem:[#allocation3 + $0x8] sm:$0xff]
        %v1119 = vld [vmem:[#allocation3 + $0x10] sm:$0xff]
        %v1120 = vld [vmem:[#allocation3 + $0x18] sm:$0xff]
        %v1122 = vlaneseq
        %v1123 = vshrl.u32 %v1122, 7
        %v1124 = vsub.s32 0, %v1123
        %v1125 = vrot.slane %v843, %v1124
        %v1127 = vadd.f32 %v1117, %v1125
        %v1128 = vadd.f32 %v1118, %v1125
        %v1129 = vadd.f32 %v1119, %v1125
        %v1130 = vadd.f32 %v1120, %v1125
        %v1131 = vsel %vm916, %v1127, -inf
        %1132 = vmax.xlane.f32.xlu0 %v1131
        %v1133 = vpop.xlane.xlu0 %1132
        %v1134 = vsel %vm916, %v1128, -inf
        %1135 = vmax.xlane.f32.xlu0 %v1134
        %v1136 = vpop.xlane.xlu0 %1135
        %v1137 = vsel %vm916, %v1129, -inf
        %1138 = vmax.xlane.f32.xlu0 %v1137
        %v1139 = vpop.xlane.xlu0 %1138
        %v1140 = vsel %vm916, %v1130, -inf
        %1141 = vmax.xlane.f32.xlu0 %v1140
        %v1142 = vpop.xlane.xlu0 %1141
        %v1143 = vsub.f32 %v1127, %v1133
        %v1144 = vsub.f32 %v1128, %v1136
        %v1145 = vsub.f32 %v1129, %v1139
        %v1146 = vsub.f32 %v1130, %v1142
        %v1147 = vmul.f32 %v1143, 1.442695
        %v1148 = vpow.pop %v1147
        %v1149 = vmul.f32 %v1144, 1.442695
        %v1150 = vpow.pop %v1149
        %v1151 = vmul.f32 %v1145, 1.442695
        %v1152 = vpow.pop %v1151
        %v1153 = vmul.f32 %v1146, 1.442695
        %v1154 = vpow.pop %v1153
        %v1155 = vsel %vm916, %v1148, 0.0
        %1156 = vadd.xlane.f32.xlu0 %v1155
        %v1157 = vpop.xlane.xlu0 %1156
        %v1158 = vsel %vm916, %v1150, 0.0
        %1159 = vadd.xlane.f32.xlu0 %v1158
        %v1160 = vpop.xlane.xlu0 %1159
        %v1161 = vsel %vm916, %v1152, 0.0
        %1162 = vadd.xlane.f32.xlu0 %v1161
        %v1163 = vpop.xlane.xlu0 %1162
        %v1164 = vsel %vm916, %v1154, 0.0
        %1165 = vadd.xlane.f32.xlu0 %v1164
        %v1166 = vpop.xlane.xlu0 %1165
        %v1167 = vrcp.pop %v1157
        %v1168 = vrcp.pop %v1160
        %v1169 = vrcp.pop %v1163
        %v1170 = vrcp.pop %v1166
        %v1171 = vmul.f32 %v1148, %v1167
        %v1172 = vmul.f32 %v1150, %v1168
        %v1173 = vmul.f32 %v1152, %v1169
        %v1174 = vmul.f32 %v1154, %v1170
        %v1175 = vpack.c.bf16 %v1172, %v1171
        %v1176 = vpack.c.bf16 %v1174, %v1173
        %1177 = vrot.lane.b32.xlu0 %v912, 64
        %v1178 = vpop.permute.xlu0 %1177
        %v1180 = vsel %vm916, %v1175, 0
        %vm1182 = vcmask 1043456
        %v1184 = vsel %vm1182, %v1178, 0
        %1186 = vmatprep.subr.bf16.mxu0 0
        %1187 = vmatpush1.bf16.msra.mxu0 %v1184
        %1188 = vmatprep.subr.bf16.mxu0 0
        %1189 = vmatpush1.bf16.msra.mxu0 0
        %1190 = vmatprep.subr.bf16.mxu0 0
        %1191 = vmatpush1.bf16.msra.mxu0 0
        %1192 = vmatprep.subr.bf16.mxu0 0
        %1193 = vmatpush1.bf16.msra.mxu0 0
        %1194 = vmatprep.subr.bf16.mxu0 0
        %1195 = vmatpush1.bf16.msra.mxu0 0
        %1196 = vmatprep.subr.bf16.mxu0 0
        %1197 = vmatpush1.bf16.msra.mxu0 0
        %1198 = vmatprep.subr.bf16.mxu0 0
        %1199 = vmatpush1.bf16.msra.mxu0 0
        %1200 = vmatprep.subr.bf16.mxu0 0
        %1201 = vmatpush1.bf16.msra.mxu0 0
        %1202 = vmatprep.subr.bf16.mxu0 0
        %1203 = vmatpush1.bf16.msra.mxu0 0
        %1204 = vmatprep.subr.bf16.mxu0 0
        %1205 = vmatpush1.bf16.msra.mxu0 0
        %1206 = vmatprep.subr.bf16.mxu0 0
        %1207 = vmatpush1.bf16.msra.mxu0 0
        %1208 = vmatprep.subr.bf16.mxu0 0
        %1209 = vmatpush1.bf16.msra.mxu0 0
        %1210 = vmatprep.subr.bf16.mxu0 0
        %1211 = vmatpush1.bf16.msra.mxu0 0
        %1212 = vmatprep.subr.bf16.mxu0 0
        %1213 = vmatpush1.bf16.msra.mxu0 0
        %1214 = vmatprep.subr.bf16.mxu0 0
        %1215 = vmatpush1.bf16.msra.mxu0 0
        %1216 = vmatprep.subr.bf16.mxu0 0
        %1217 = vmatpush1.bf16.msra.mxu0 0
        %1218 = vmatprep.mubr.bf16.mxu0 0
        %1219 = vmatmul.mubr.bf16.gmra.mrb[0].mxu0 %v1180
        %v1220 = vpop.f32.mrb[0].mxu0
        %v1221 = vadd.f32 0.0, %v1220
        %v1222 = vpop.f32.mrb[0].mxu0
        %v1223 = vpop.f32.mrb[0].mxu0
        %v1224 = vpop.f32.mrb[0].mxu0
        %1225 = vdwg.mxu0
        %1226 = vst.msk [vmem:[#allocation4] sm:$0xff] %vm916, %v1221
        %v1228 = vrot.slane %v1175, 4
        %1229 = vrot.lane.b32.xlu0 %v912, 56
        %v1230 = vpop.permute.xlu0 %1229
        %v1232 = vsel %vm916, %v1228, 0
        %v1235 = vsel %vm1182, %v1230, 0
        %1237 = vmatprep.subr.bf16.mxu0 0
        %1238 = vmatpush1.bf16.msra.mxu0 %v1235
        %1239 = vmatprep.subr.bf16.mxu0 0
        %1240 = vmatpush1.bf16.msra.mxu0 0
        %1241 = vmatprep.subr.bf16.mxu0 0
        %1242 = vmatpush1.bf16.msra.mxu0 0
        %1243 = vmatprep.subr.bf16.mxu0 0
        %1244 = vmatpush1.bf16.msra.mxu0 0
        %1245 = vmatprep.subr.bf16.mxu0 0
        %1246 = vmatpush1.bf16.msra.mxu0 0
        %1247 = vmatprep.subr.bf16.mxu0 0
        %1248 = vmatpush1.bf16.msra.mxu0 0
        %1249 = vmatprep.subr.bf16.mxu0 0
        %1250 = vmatpush1.bf16.msra.mxu0 0
        %1251 = vmatprep.subr.bf16.mxu0 0
        %1252 = vmatpush1.bf16.msra.mxu0 0
        %1253 = vmatprep.subr.bf16.mxu0 0
        %1254 = vmatpush1.bf16.msra.mxu0 0
        %1255 = vmatprep.subr.bf16.mxu0 0
        %1256 = vmatpush1.bf16.msra.mxu0 0
        %1257 = vmatprep.subr.bf16.mxu0 0
        %1258 = vmatpush1.bf16.msra.mxu0 0
        %1259 = vmatprep.subr.bf16.mxu0 0
        %1260 = vmatpush1.bf16.msra.mxu0 0
        %1261 = vmatprep.subr.bf16.mxu0 0
        %1262 = vmatpush1.bf16.msra.mxu0 0
        %1263 = vmatprep.subr.bf16.mxu0 0
        %1264 = vmatpush1.bf16.msra.mxu0 0
        %1265 = vmatprep.subr.bf16.mxu0 0
        %1266 = vmatpush1.bf16.msra.mxu0 0
        %1267 = vmatprep.subr.bf16.mxu0 0
        %1268 = vmatpush1.bf16.msra.mxu0 0
        %1269 = vmatprep.mubr.bf16.mxu0 0
        %1270 = vmatmul.mubr.bf16.gmra.mrb[0].mxu0 %v1232
        %v1271 = vpop.f32.mrb[0].mxu0
        %v1272 = vadd.f32 0.0, %v1271
        %v1273 = vpop.f32.mrb[0].mxu0
        %v1274 = vpop.f32.mrb[0].mxu0
        %v1275 = vpop.f32.mrb[0].mxu0
        %1276 = vdwg.mxu0
        %1278 = vrot.lane.b32.xlu0 %v1272, 8
        %v1279 = vpop.permute.xlu0 %1278
        %vm1281 = vcmask 130112
        %1282 = vst.msk [vmem:[#allocation4] sm:$0xff] %vm1281, %v1279
        %1283 = vrot.lane.b32.xlu0 %v912, 48
        %v1284 = vpop.permute.xlu0 %1283
        %v1286 = vsel %vm916, %v1176, 0
        %v1289 = vsel %vm1182, %v1284, 0
        %1291 = vmatprep.subr.bf16.mxu0 0
        %1292 = vmatpush1.bf16.msra.mxu0 %v1289
        %1293 = vmatprep.subr.bf16.mxu0 0
        %1294 = vmatpush1.bf16.msra.mxu0 0
        %1295 = vmatprep.subr.bf16.mxu0 0
        %1296 = vmatpush1.bf16.msra.mxu0 0
        %1297 = vmatprep.subr.bf16.mxu0 0
        %1298 = vmatpush1.bf16.msra.mxu0 0
        %1299 = vmatprep.subr.bf16.mxu0 0
        %1300 = vmatpush1.bf16.msra.mxu0 0
        %1301 = vmatprep.subr.bf16.mxu0 0
        %1302 = vmatpush1.bf16.msra.mxu0 0
        %1303 = vmatprep.subr.bf16.mxu0 0
        %1304 = vmatpush1.bf16.msra.mxu0 0
        %1305 = vmatprep.subr.bf16.mxu0 0
        %1306 = vmatpush1.bf16.msra.mxu0 0
        %1307 = vmatprep.subr.bf16.mxu0 0
        %1308 = vmatpush1.bf16.msra.mxu0 0
        %1309 = vmatprep.subr.bf16.mxu0 0
        %1310 = vmatpush1.bf16.msra.mxu0 0
        %1311 = vmatprep.subr.bf16.mxu0 0
        %1312 = vmatpush1.bf16.msra.mxu0 0
        %1313 = vmatprep.subr.bf16.mxu0 0
        %1314 = vmatpush1.bf16.msra.mxu0 0
        %1315 = vmatprep.subr.bf16.mxu0 0
        %1316 = vmatpush1.bf16.msra.mxu0 0
        %1317 = vmatprep.subr.bf16.mxu0 0
        %1318 = vmatpush1.bf16.msra.mxu0 0
        %1319 = vmatprep.subr.bf16.mxu0 0
        %1320 = vmatpush1.bf16.msra.mxu0 0
        %1321 = vmatprep.subr.bf16.mxu0 0
        %1322 = vmatpush1.bf16.msra.mxu0 0
        %1323 = vmatprep.mubr.bf16.mxu0 0
        %1324 = vmatmul.mubr.bf16.gmra.mrb[0].mxu0 %v1286
        %v1325 = vpop.f32.mrb[0].mxu0
        %v1326 = vadd.f32 0.0, %v1325
        %v1327 = vpop.f32.mrb[0].mxu0
        %v1328 = vpop.f32.mrb[0].mxu0
        %v1329 = vpop.f32.mrb[0].mxu0
        %1330 = vdwg.mxu0
        %1332 = vrot.lane.b32.xlu0 %v1326, 16
        %v1333 = vpop.permute.xlu0 %1332
        %vm1335 = vcmask 195712
        %1336 = vst.msk [vmem:[#allocation4] sm:$0xff] %vm1335, %v1333
        %v1338 = vrot.slane %v1176, 4
        %1339 = vrot.lane.b32.xlu0 %v912, 40
        %v1340 = vpop.permute.xlu0 %1339
        %v1342 = vsel %vm916, %v1338, 0
        %v1345 = vsel %vm1182, %v1340, 0
        %1347 = vmatprep.subr.bf16.mxu0 0
        %1348 = vmatpush1.bf16.msra.mxu0 %v1345
        %1349 = vmatprep.subr.bf16.mxu0 0
        %1350 = vmatpush1.bf16.msra.mxu0 0
        %1351 = vmatprep.subr.bf16.mxu0 0
        %1352 = vmatpush1.bf16.msra.mxu0 0
        %1353 = vmatprep.subr.bf16.mxu0 0
        %1354 = vmatpush1.bf16.msra.mxu0 0
        %1355 = vmatprep.subr.bf16.mxu0 0
        %1356 = vmatpush1.bf16.msra.mxu0 0
        %1357 = vmatprep.subr.bf16.mxu0 0
        %1358 = vmatpush1.bf16.msra.mxu0 0
        %1359 = vmatprep.subr.bf16.mxu0 0
        %1360 = vmatpush1.bf16.msra.mxu0 0
        %1361 = vmatprep.subr.bf16.mxu0 0
        %1362 = vmatpush1.bf16.msra.mxu0 0
        %1363 = vmatprep.subr.bf16.mxu0 0
        %1364 = vmatpush1.bf16.msra.mxu0 0
        %1365 = vmatprep.subr.bf16.mxu0 0
        %1366 = vmatpush1.bf16.msra.mxu0 0
        %1367 = vmatprep.subr.bf16.mxu0 0
        %1368 = vmatpush1.bf16.msra.mxu0 0
        %1369 = vmatprep.subr.bf16.mxu0 0
        %1370 = vmatpush1.bf16.msra.mxu0 0
        %1371 = vmatprep.subr.bf16.mxu0 0
        %1372 = vmatpush1.bf16.msra.mxu0 0
        %1373 = vmatprep.subr.bf16.mxu0 0
        %1374 = vmatpush1.bf16.msra.mxu0 0
        %1375 = vmatprep.subr.bf16.mxu0 0
        %1376 = vmatpush1.bf16.msra.mxu0 0
        %1377 = vmatprep.subr.bf16.mxu0 0
        %1378 = vmatpush1.bf16.msra.mxu0 0
        %1379 = vmatprep.mubr.bf16.mxu0 0
        %1380 = vmatmul.mubr.bf16.gmra.mrb[0].mxu0 %v1342
        %v1381 = vpop.f32.mrb[0].mxu0
        %v1382 = vadd.f32 0.0, %v1381
        %v1383 = vpop.f32.mrb[0].mxu0
        %v1384 = vpop.f32.mrb[0].mxu0
        %v1385 = vpop.f32.mrb[0].mxu0
        %1386 = vdwg.mxu0
        %1388 = vrot.lane.b32.xlu0 %v1382, 24
        %v1389 = vpop.permute.xlu0 %1388
        %vm1391 = vcmask 261312
        %1392 = vst.msk [vmem:[#allocation4] sm:$0xff] %vm1391, %v1389
        %v1393 = vld [vmem:[#allocation4] sm:$0xff]
        %v1394 = vpack.c.bf16 %v1393, %v1393
        %v1395 = vld [vmem:[%s769] sm:$0xf]
        %v1396 = vld [vmem:[%s769 + $0x4] sm:$0xf]
        %v1397 = vld [vmem:[%s769 + $0x8] sm:$0xf]
        %v1398 = vld [vmem:[%s769 + $0xc] sm:$0xf]
        %v1399 = vld [vmem:[%s772] sm:$0x1]
        %v1401 = vlaneseq
        %v1402 = vshrl.u32 %v1401, 7
        %v1403 = vsub.s32 0, %v1402
        %v1404 = vrot.slane %v1399, %v1403
        %v1410 = vunpack.c.l.b16 %v1395
        %v1411 = vunpack.c.l.b16 %v1396
        %v1412 = vunpack.c.l.b16 %v1397
        %v1413 = vunpack.c.l.b16 %v1398
        %v1414 = vpack.c.b16 %v1411, %v1410
        %v1415 = vpack.c.b16 %v1413, %v1412
        %v1419 = vsel %vm868, %v1394, 0
        %1421 = vmatprep.subr.bf16.mxu0 0
        %1422 = vmatpush1.bf16.msra.mxu0 %v1414
        %1423 = vmatprep.subr.bf16.mxu0 0
        %1424 = vmatpush1.bf16.msra.mxu0 %v1415
        %1425 = vmatprep.subr.bf16.mxu0 0
        %1426 = vmatpush1.bf16.msra.mxu0 0
        %1427 = vmatprep.subr.bf16.mxu0 0
        %1428 = vmatpush1.bf16.msra.mxu0 0
        %1429 = vmatprep.subr.bf16.mxu0 0
        %1430 = vmatpush1.bf16.msra.mxu0 0
        %1431 = vmatprep.subr.bf16.mxu0 0
        %1432 = vmatpush1.bf16.msra.mxu0 0
        %1433 = vmatprep.subr.bf16.mxu0 0
        %1434 = vmatpush1.bf16.msra.mxu0 0
        %1435 = vmatprep.subr.bf16.mxu0 0
        %1436 = vmatpush1.bf16.msra.mxu0 0
        %1437 = vmatprep.subr.bf16.mxu0 0
        %1438 = vmatpush1.bf16.msra.mxu0 0
        %1439 = vmatprep.subr.bf16.mxu0 0
        %1440 = vmatpush1.bf16.msra.mxu0 0
        %1441 = vmatprep.subr.bf16.mxu0 0
        %1442 = vmatpush1.bf16.msra.mxu0 0
        %1443 = vmatprep.subr.bf16.mxu0 0
        %1444 = vmatpush1.bf16.msra.mxu0 0
        %1445 = vmatprep.subr.bf16.mxu0 0
        %1446 = vmatpush1.bf16.msra.mxu0 0
        %1447 = vmatprep.subr.bf16.mxu0 0
        %1448 = vmatpush1.bf16.msra.mxu0 0
        %1449 = vmatprep.subr.bf16.mxu0 0
        %1450 = vmatpush1.bf16.msra.mxu0 0
        %1451 = vmatprep.subr.bf16.mxu0 0
        %1452 = vmatpush1.bf16.msra.mxu0 0
        %1453 = vmatprep.mubr.bf16.mxu0 0
        %1454 = vmatmul.mubr.bf16.gmra.mrb[0].mxu0 %v1419
        %v1455 = vpop.f32.mrb[0].mxu0
        %v1456 = vadd.f32 %v1404, %v1455
        %v1457 = vpop.f32.mrb[0].mxu0
        %v1458 = vpop.f32.mrb[0].mxu0
        %v1459 = vpop.f32.mrb[0].mxu0
        %1460 = vdwg.mxu0
        %v1461 = vadd.f32 %v1456, %v840
        %v1462 = vld [vmem:[%s775] sm:$0x1]
        %v1463 = vld [vmem:[%s778] sm:$0x1]
        %v1464 = vsel %vm868, %v1461, 0.0
        %1465 = vadd.xlane.f32.xlu0 %v1464
        %v1466 = vpop.xlane.xlu0 %1465
        %v1467 = vrcp.pop 32.0
        %v1468 = vmul.f32 %v1466, %v1467
        %v1469 = vsub.f32 %v1461, %v1468
        %v1470 = vmul.f32 %v1469, %v1469
        %v1471 = vsel %vm868, %v1470, 0.0
        %1472 = vadd.xlane.f32.xlu0 %v1471
        %v1473 = vpop.xlane.xlu0 %1472
        %v1474 = vmul.f32 %v1473, %v1467
        %v1475 = vadd.f32 %v1474, 1e-12
        %v1476 = vrsqrt.pop %v1475
        %v1477 = vmul.f32 %v1469, %v1476
        %v1479 = vlaneseq
        %v1480 = vshrl.u32 %v1479, 7
        %v1481 = vsub.s32 0, %v1480
        %v1482 = vrot.slane %v1462, %v1481
        %v1484 = vmul.f32 %v1477, %v1482
        %v1486 = vlaneseq
        %v1487 = vshrl.u32 %v1486, 7
        %v1488 = vsub.s32 0, %v1487
        %v1489 = vrot.slane %v1463, %v1488
        %v1491 = vadd.f32 %v1484, %v1489
        %v1492 = vpack.c.bf16 %v1491, %v1491
        %v1493 = vld [vmem:[%s783] sm:$0xf]
        %v1494 = vld [vmem:[%s783 + $0x4] sm:$0xf]
        %v1495 = vld [vmem:[%s783 + $0x8] sm:$0xf]
        %v1496 = vld [vmem:[%s783 + $0xc] sm:$0xf]
        %v1497 = vld [vmem:[%s786] sm:$0x1]
        %v1499 = vlaneseq
        %v1500 = vshrl.u32 %v1499, 7
        %v1501 = vsub.s32 0, %v1500
        %v1502 = vrot.slane %v1497, %v1501
        %v1508 = vunpack.c.l.b16 %v1493
        %v1509 = vunpack.c.l.b16 %v1494
        %v1510 = vunpack.c.l.b16 %v1495
        %v1511 = vunpack.c.l.b16 %v1496
        %v1512 = vpack.c.b16 %v1509, %v1508
        %v1513 = vpack.c.b16 %v1511, %v1510
        %v1517 = vsel %vm868, %v1492, 0
        %1519 = vmatprep.subr.bf16.mxu0 0
        %1520 = vmatpush1.bf16.msra.mxu0 %v1512
        %1521 = vmatprep.subr.bf16.mxu0 0
        %1522 = vmatpush1.bf16.msra.mxu0 %v1513
        %1523 = vmatprep.subr.bf16.mxu0 0
        %1524 = vmatpush1.bf16.msra.mxu0 0
        %1525 = vmatprep.subr.bf16.mxu0 0
        %1526 = vmatpush1.bf16.msra.mxu0 0
        %1527 = vmatprep.subr.bf16.mxu0 0
        %1528 = vmatpush1.bf16.msra.mxu0 0
        %1529 = vmatprep.subr.bf16.mxu0 0
        %1530 = vmatpush1.bf16.msra.mxu0 0
        %1531 = vmatprep.subr.bf16.mxu0 0
        %1532 = vmatpush1.bf16.msra.mxu0 0
        %1533 = vmatprep.subr.bf16.mxu0 0
        %1534 = vmatpush1.bf16.msra.mxu0 0
        %1535 = vmatprep.subr.bf16.mxu0 0
        %1536 = vmatpush1.bf16.msra.mxu0 0
        %1537 = vmatprep.subr.bf16.mxu0 0
        %1538 = vmatpush1.bf16.msra.mxu0 0
        %1539 = vmatprep.subr.bf16.mxu0 0
        %1540 = vmatpush1.bf16.msra.mxu0 0
        %1541 = vmatprep.subr.bf16.mxu0 0
        %1542 = vmatpush1.bf16.msra.mxu0 0
        %1543 = vmatprep.subr.bf16.mxu0 0
        %1544 = vmatpush1.bf16.msra.mxu0 0
        %1545 = vmatprep.subr.bf16.mxu0 0
        %1546 = vmatpush1.bf16.msra.mxu0 0
        %1547 = vmatprep.subr.bf16.mxu0 0
        %1548 = vmatpush1.bf16.msra.mxu0 0
        %1549 = vmatprep.subr.bf16.mxu0 0
        %1550 = vmatpush1.bf16.msra.mxu0 0
        %1551 = vmatprep.mubr.bf16.mxu0 0
        %1552 = vmatmul.mubr.bf16.gmra.mrb[0].mxu0 %v1517
        %v1553 = vpop.f32.mrb[0].mxu0
        %v1554 = vadd.f32 %v1502, %v1553
        %v1555 = vpop.f32.mrb[0].mxu0
        %v1556 = vpop.f32.mrb[0].mxu0
        %v1557 = vpop.f32.mrb[0].mxu0
        %1558 = vdwg.mxu0
        %v1559 = vmul.f32 %v1554, %v1554
        %v1560 = vmul.f32 %v1554, %v1559
        %v1561 = vmul.f32 %v1560, 0.044715
        %v1562 = vadd.f32 %v1554, %v1561
        %v1563 = vmul.f32 %v1562, 0.7978846
        %v1564 = vtanh.pop %v1563
        %v1565 = vadd.f32 %v1564, 1.0
        %v1566 = vmul.f32 %v1565, 0.5
        %v1567 = vmul.f32 %v1554, %v1566
        %v1568 = vpack.c.bf16 %v1567, %v1567
        %v1569 = vld [vmem:[%s791] sm:$0xf]
        %v1570 = vld [vmem:[%s791 + $0x4] sm:$0xf]
        %v1571 = vld [vmem:[%s791 + $0x8] sm:$0xf]
        %v1572 = vld [vmem:[%s791 + $0xc] sm:$0xf]
        %v1573 = vld [vmem:[%s791 + $0x10] sm:$0xf]
        %v1574 = vld [vmem:[%s791 + $0x14] sm:$0xf]
        %v1575 = vld [vmem:[%s791 + $0x18] sm:$0xf]
        %v1576 = vld [vmem:[%s791 + $0x1c] sm:$0xf]
        %v1577 = vld [vmem:[%s794] sm:$0x1]
        %v1579 = vlaneseq
        %v1580 = vshrl.u32 %v1579, 7
        %v1581 = vsub.s32 0, %v1580
        %v1582 = vrot.slane %v1577, %v1581
        %v1592 = vunpack.c.l.b16 %v1569
        %v1593 = vunpack.c.l.b16 %v1570
        %v1594 = vunpack.c.l.b16 %v1571
        %v1595 = vunpack.c.l.b16 %v1572
        %v1596 = vunpack.c.l.b16 %v1573
        %v1597 = vunpack.c.l.b16 %v1574
        %v1598 = vunpack.c.l.b16 %v1575
        %v1599 = vunpack.c.l.b16 %v1576
        %v1600 = vpack.c.b16 %v1593, %v1592
        %v1601 = vpack.c.b16 %v1595, %v1594
        %v1602 = vpack.c.b16 %v1597, %v1596
        %v1603 = vpack.c.b16 %v1599, %v1598
        %vm1608 = vcmask 523264
        %v1610 = vsel %vm1608, %v1568, 0
        %1612 = vmatprep.subr.bf16.mxu0 0
        %1613 = vmatpush1.bf16.msra.mxu0 %v1600
        %1614 = vmatprep.subr.bf16.mxu0 0
        %1615 = vmatpush1.bf16.msra.mxu0 %v1601
        %1616 = vmatprep.subr.bf16.mxu0 0
        %1617 = vmatpush1.bf16.msra.mxu0 %v1602
        %1618 = vmatprep.subr.bf16.mxu0 0
        %1619 = vmatpush1.bf16.msra.mxu0 %v1603
        %1620 = vmatprep.subr.bf16.mxu0 0
        %1621 = vmatpush1.bf16.msra.mxu0 0
        %1622 = vmatprep.subr.bf16.mxu0 0
        %1623 = vmatpush1.bf16.msra.mxu0 0
        %1624 = vmatprep.subr.bf16.mxu0 0
        %1625 = vmatpush1.bf16.msra.mxu0 0
        %1626 = vmatprep.subr.bf16.mxu0 0
        %1627 = vmatpush1.bf16.msra.mxu0 0
        %1628 = vmatprep.subr.bf16.mxu0 0
        %1629 = vmatpush1.bf16.msra.mxu0 0
        %1630 = vmatprep.subr.bf16.mxu0 0
        %1631 = vmatpush1.bf16.msra.mxu0 0
        %1632 = vmatprep.subr.bf16.mxu0 0
        %1633 = vmatpush1.bf16.msra.mxu0 0
        %1634 = vmatprep.subr.bf16.mxu0 0
        %1635 = vmatpush1.bf16.msra.mxu0 0
        %1636 = vmatprep.subr.bf16.mxu0 0
        %1637 = vmatpush1.bf16.msra.mxu0 0
        %1638 = vmatprep.subr.bf16.mxu0 0
        %1639 = vmatpush1.bf16.msra.mxu0 0
        %1640 = vmatprep.subr.bf16.mxu0 0
        %1641 = vmatpush1.bf16.msra.mxu0 0
        %1642 = vmatprep.subr.bf16.mxu0 0
        %1643 = vmatpush1.bf16.msra.mxu0 0
        %1644 = vmatprep.mubr.bf16.mxu0 0
        %1645 = vmatmul.mubr.bf16.gmra.mrb[0].mxu0 %v1610
        %v1646 = vpop.f32.mrb[0].mxu0
        %v1647 = vadd.f32 %v1582, %v1646
        %v1648 = vpop.f32.mrb[0].mxu0
        %v1649 = vpop.f32.mrb[0].mxu0
        %v1650 = vpop.f32.mrb[0].mxu0
        %1651 = vdwg.mxu0
        %v1652 = vadd.f32 %v1647, %v1491
        %v1653 = vld [vmem:[%s797] sm:$0x1]
        %v1654 = vld [vmem:[%s800] sm:$0x1]
        %v1655 = vsel %vm868, %v1652, 0.0
        %1656 = vadd.xlane.f32.xlu0 %v1655
        %v1657 = vpop.xlane.xlu0 %1656
        %v1658 = vmul.f32 %v1657, %v1467
        %v1659 = vsub.f32 %v1652, %v1658
        %v1660 = vmul.f32 %v1659, %v1659
        %v1661 = vsel %vm868, %v1660, 0.0
        %1662 = vadd.xlane.f32.xlu0 %v1661
        %v1663 = vpop.xlane.xlu0 %1662
        %v1664 = vmul.f32 %v1663, %v1467
        %v1665 = vadd.f32 %v1664, 1e-12
        %v1666 = vrsqrt.pop %v1665
        %v1667 = vmul.f32 %v1659, %v1666
        %v1669 = vlaneseq
        %v1670 = vshrl.u32 %v1669, 7
        %v1671 = vsub.s32 0, %v1670
        %v1672 = vrot.slane %v1653, %v1671
        %v1674 = vmul.f32 %v1667, %v1672
        %v1676 = vlaneseq
        %v1677 = vshrl.u32 %v1676, 7
        %v1678 = vsub.s32 0, %v1677
        %v1679 = vrot.slane %v1654, %v1678
        %v1681 = vadd.f32 %v1674, %v1679
        %1682 = vst.msk [vmem:[#allocation2] sm:$0xff] %vm868, %v1681
        %p1683 = scmp.eq.s32.totalorder %s38, 1
        // Predicated region
        $region101: #{tpu_custom_call.1} parent=91 // pred_check
          %p1684 = pneg %p1683
        $region102: #{tpu_custom_call.1} parent=91 // pred_check_branch
          %1686 = sbr.rel (%p1684) target = $region104
        $region103: #{tpu_custom_call.1} parent=91 // pred_region
          %v1687 = vpack.c.bf16 %v1681, %v1681
          %v1688 = vld [vmem:[%s16] sm:$0xf]
          %v1689 = vld [vmem:[%s16 + $0x4] sm:$0xf]
          %v1690 = vld [vmem:[%s16 + $0x8] sm:$0xf]
          %v1691 = vld [vmem:[%s16 + $0xc] sm:$0xf]
          %v1692 = vld [vmem:[%s17] sm:$0x1]
          %v1697 = vunpack.c.l.b16 %v1688
          %v1698 = vunpack.c.l.b16 %v1689
          %v1699 = vunpack.c.l.b16 %v1690
          %v1700 = vunpack.c.l.b16 %v1691
          %v1701 = vpack.c.b16 %v1698, %v1697
          %v1702 = vpack.c.b16 %v1700, %v1699
          %v1706 = vsel %vm868, %v1687, 0
          %1708 = vmatprep.subr.bf16.mxu0 0
          %1709 = vmatpush1.bf16.msra.mxu0 %v1701
          %1710 = vmatprep.subr.bf16.mxu0 0
          %1711 = vmatpush1.bf16.msra.mxu0 %v1702
          %1712 = vmatprep.subr.bf16.mxu0 0
          %1713 = vmatpush1.bf16.msra.mxu0 0
          %1714 = vmatprep.subr.bf16.mxu0 0
          %1715 = vmatpush1.bf16.msra.mxu0 0
          %1716 = vmatprep.subr.bf16.mxu0 0
          %1717 = vmatpush1.bf16.msra.mxu0 0
          %1718 = vmatprep.subr.bf16.mxu0 0
          %1719 = vmatpush1.bf16.msra.mxu0 0
          %1720 = vmatprep.subr.bf16.mxu0 0
          %1721 = vmatpush1.bf16.msra.mxu0 0
          %1722 = vmatprep.subr.bf16.mxu0 0
          %1723 = vmatpush1.bf16.msra.mxu0 0
          %1724 = vmatprep.subr.bf16.mxu0 0
          %1725 = vmatpush1.bf16.msra.mxu0 0
          %1726 = vmatprep.subr.bf16.mxu0 0
          %1727 = vmatpush1.bf16.msra.mxu0 0
          %1728 = vmatprep.subr.bf16.mxu0 0
          %1729 = vmatpush1.bf16.msra.mxu0 0
          %1730 = vmatprep.subr.bf16.mxu0 0
          %1731 = vmatpush1.bf16.msra.mxu0 0
          %1732 = vmatprep.subr.bf16.mxu0 0
          %1733 = vmatpush1.bf16.msra.mxu0 0
          %1734 = vmatprep.subr.bf16.mxu0 0
          %1735 = vmatpush1.bf16.msra.mxu0 0
          %1736 = vmatprep.subr.bf16.mxu0 0
          %1737 = vmatpush1.bf16.msra.mxu0 0
          %1738 = vmatprep.subr.bf16.mxu0 0
          %1739 = vmatpush1.bf16.msra.mxu0 0
          %1740 = vmatprep.mubr.bf16.mxu0 0
          %1741 = vmatmul.mubr.bf16.gmra.mrb[0].mxu0 %v1706
          %v1742 = vpop.f32.mrb[0].mxu0
          %v1743 = vadd.f32 %v1692, %v1742
          %v1744 = vpop.f32.mrb[0].mxu0
          %v1745 = vpop.f32.mrb[0].mxu0
          %v1746 = vpop.f32.mrb[0].mxu0
          %1747 = vdwg.mxu0
          %vm1748 = vcmask 8192
          %1749 = vst.msk [vmem:[%s749] sm:$0x1] %vm1748, %v1743
        $region104: #{tpu_custom_call.1} parent=91 // pred_fallthru
          _
        %s1750 = sand.u32 %s501, 1
        %s1751 = scalar_lea.sflag [#allocation7], %s1750
        %s1752 = sand.u32 %s501, 1
        %s1753 = scalar_lea.vmem [#allocation8], %s1752
        // Predicated region
        $region105: #{tpu_custom_call.1} parent=91 // pred_check
          %p1754 = pneg %p511
        $region106: #{tpu_custom_call.1} parent=91 // pred_check_branch
          %1756 = sbr.rel (%p1754) target = $region108
        $region107: #{tpu_custom_call.1} parent=91 // pred_region
          %s1758 = ssub.s32 16, 16
          %1759 = vsyncadd %s1751, %s1758
          %s1760 = smul.addr %s37, 16
          %s1761 = scalar_lea.hbm %s18, %s1760
          %s1763 = sshll.u32 %s1753, 4
          %s1764 = int_to_ptr.vmem [resolvable:$true] %s1763
          %1766 = dma.vmem_to_hbm [thread:$0]  %s1764, 16, %s1761, %s1751
        $region108: #{tpu_custom_call.1} parent=91 // pred_fallthru
          _
      $region92: #{tpu_custom_call.1} parent=5 // pred_fallthru
        _
      %p1767 = scmp.le.s32.totalorder 2, %s28
      // Predicated region
      $region109: #{tpu_custom_call.1} parent=5 // pred_check
        %p1768 = pneg %p1767
      $region110: #{tpu_custom_call.1} parent=5 // pred_check_branch
        %1770 = sbr.rel (%p1768) target = $region112
      $region111: #{tpu_custom_call.1} parent=5 // pred_region
        %s1771 = ssub.s32 %s28, 2
        // Predicated region
        $region113: #{tpu_custom_call.1} parent=111 // pred_check
          %p1772 = pneg %p517
        $region114: #{tpu_custom_call.1} parent=111 // pred_check_branch
          %1774 = sbr.rel (%p1772) target = $region116
        $region115: #{tpu_custom_call.1} parent=111 // pred_region
          %s1775 = sand.u32 %s502, 1
          %s1776 = scalar_lea.sflag [#allocation7], %s1775
          %s1777 = sand.u32 %s502, 1
          %s1778 = scalar_lea.vmem [#allocation8], %s1777
          %1779 = dma.done %s1776, 16
        $region116: #{tpu_custom_call.1} parent=111 // pred_fallthru
          _
      $region112: #{tpu_custom_call.1} parent=5 // pred_fallthru
        _
    $region6: #{tpu_custom_call.1} parent=1 // loop_footer
      %s32 = sadd.s32 1, %s28
    $region7: #{tpu_custom_call.1} parent=1 // loop_footer_branch
      %27 = sbr.rel target = $region3
    $region8: #{tpu_custom_call.1} parent=1 // loop_exit
      _
    %1780 = vsyncpa [#allocation6], 1
    %s1781 = scalar_lea.sflag [#allocation6], 1
    %1782 = vsyncpa %s1781, 1
    %1783 = vsyncpa [#allocation7], 1
    %s1784 = scalar_lea.sflag [#allocation7], 1
    %1785 = vsyncpa %s1784, 1

</llo_original>
